<compile_context>
chip_gen: v5e
topology: v5e:2x2
jax: 0.10.0
libtpu: 0.0.40
codegen_flags: <defaults>
</compile_context>

<pallas_src>
import jax
import jax.numpy as jnp
from jax import lax
from jax.experimental import pallas as pl
from jax.experimental.pallas import tpu as pltpu


def _round_up(n, m):
    return (n + m - 1) // m * m


def _layernorm(x, gamma, beta, eps=1e-5):
    # f32 statistics, biased variance — matches nn.LayerNorm defaults.
    mu = jnp.mean(x, axis=-1, keepdims=True)
    var = jnp.mean((x - mu) * (x - mu), axis=-1, keepdims=True)
    return (x - mu) * lax.rsqrt(var + eps) * gamma + beta


def mlp_kernel(x_ref, w1_ref, b1_ref, g1_ref, be1_ref,
               w2_ref, b2_ref, g2_ref, be2_ref, o_ref):
    # ---- layer 1: Linear (bf16 MXU, f32 acc) -> ReLU -> LayerNorm (f32) ----
    h = jnp.dot(x_ref[...], w1_ref[...], preferred_element_type=jnp.float32)
    h = jnp.maximum(h + b1_ref[...], 0.0)
    h = _layernorm(h, g1_ref[...], be1_ref[...])

    # ---- layer 2: Linear (bf16 MXU, f32 acc) -> ReLU -> LayerNorm (f32) ----
    y = jnp.dot(h.astype(w2_ref.dtype), w2_ref[...],
                preferred_element_type=jnp.float32)
    y = jnp.maximum(y + b2_ref[...], 0.0)
    y = _layernorm(y, g2_ref[...], be2_ref[...])

    o_ref[...] = y.astype(o_ref.dtype)


def mlp_forward(x, params, tile_b=128):
    w1, b1, g1, be1, w2, b2, g2, be2 = params
    B = x.shape[0]
    in_size, hid_size = w1.shape
    out_size = w2.shape[1]

    # Batch tile: multiple of 8 sublanes; pad B up so the grid divides evenly.
    tb = min(tile_b, _round_up(B, 8))
    Bp = _round_up(B, tb)
    if Bp != B:
        x = jnp.pad(x, ((0, Bp - B), (0, 0)))
    grid = (Bp // tb,)

    def resident(a):
        # Whole array, same block every grid step -> fetched once, stays in VMEM.
        return pl.BlockSpec(a.shape, lambda i: tuple(0 for _ in a.shape))

    in_specs = [
        pl.BlockSpec((tb, in_size), lambda i: (i, 0)),   # x streams over batch tiles
        resident(w1), resident(b1), resident(g1), resident(be1),
        resident(w2), resident(b2), resident(g2), resident(be2),
    ]
    out_spec = pl.BlockSpec((tb, out_size), lambda i: (i, 0))

    out = pl.pallas_call(
        mlp_kernel,
        out_shape=jax.ShapeDtypeStruct((Bp, out_size), x.dtype),
        grid=grid,
        in_specs=in_specs,
        out_specs=out_spec,
        compiler_params=pltpu.CompilerParams(
            dimension_semantics=("parallel",)),
    )(x, w1, b1, g1, be1, w2, b2, g2, be2)
    return out[:B]


def init_params(key, input_size, hidden_size, output_size):
    k1, k2, k3, k4 = jax.random.split(key, 4)
    # Linear layers: uniform(-1/sqrt(fan_in), 1/sqrt(fan_in)) like torch reset_parameters.
    lim1 = 1.0 / (input_size ** 0.5)
    w1 = jax.random.uniform(k1, (input_size, hidden_size), jnp.float32, -lim1, lim1)
    b1 = jax.random.uniform(k2, (1, hidden_size), jnp.float32, -lim1, lim1)
    lim2 = 1.0 / (hidden_size ** 0.5)
    w2 = jax.random.uniform(k3, (hidden_size, output_size), jnp.float32, -lim2, lim2)
    b2 = jax.random.uniform(k4, (1, output_size), jnp.float32, -lim2, lim2)
    # LayerNorm affine params: reset_parameters -> ones / zeros (kept in f32).
    g1 = jnp.ones((1, hidden_size), jnp.float32)
    be1 = jnp.zeros((1, hidden_size), jnp.float32)
    g2 = jnp.ones((1, output_size), jnp.float32)
    be2 = jnp.zeros((1, output_size), jnp.float32)
    # Weights in bf16 for the MXU; biases / LN params stay f32.
    return (w1.astype(jnp.bfloat16), b1, g1, be1,
            w2.astype(jnp.bfloat16), b2, g2, be2)


def reference_forward(x, params):
    # Pure-JAX reference with the same mixed-precision scheme as the kernel.
    w1, b1, g1, be1, w2, b2, g2, be2 = params
    xf = x.astype(jnp.float32)
    h = jnp.maximum(xf @ w1.astype(jnp.float32) + b1, 0.0)
    h = _layernorm(h, g1, be1)
    h = h.astype(jnp.bfloat16).astype(jnp.float32)  # kernel feeds layer 2 with bf16
    y = jnp.maximum(h @ w2.astype(jnp.float32) + b2, 0.0)
    return _layernorm(y, g2, be2)


if __name__ == "__main__":
    key = jax.random.PRNGKey(0)
    kx, kp = jax.random.split(key)

    # Lane-dense (multiple-of-128) feature dims; batch big enough for a 2-step grid.
    batch, input_size, hidden_size, output_size = 256, 128, 128, 128
    x = jax.random.normal(kx, (batch, input_size), jnp.float32).astype(jnp.bfloat16)
    params = init_params(kp, input_size, hidden_size, output_size)

    out = mlp_forward(x, params, tile_b=128)
    jax.block_until_ready(out)

    ref = reference_forward(x, params)
    assert out.shape == (batch, output_size)
    assert out.dtype == jnp.bfloat16
    assert jnp.allclose(out.astype(jnp.float32), ref, atol=5e-2, rtol=5e-2)

    print("KERNEL_OK")
</pallas_src>

<mosaic_0001>
module attributes {stable_mosaic.version = 11 : i64} {
  func.func @mlp_kernel(%arg0: i32, %arg1: memref<128x128xbf16, #tpu.memory_space<vmem>>, %arg2: memref<128x128xbf16, #tpu.memory_space<vmem>>, %arg3: memref<1x128xf32, #tpu.memory_space<vmem>>, %arg4: memref<1x128xf32, #tpu.memory_space<vmem>>, %arg5: memref<1x128xf32, #tpu.memory_space<vmem>>, %arg6: memref<128x128xbf16, #tpu.memory_space<vmem>>, %arg7: memref<1x128xf32, #tpu.memory_space<vmem>>, %arg8: memref<1x128xf32, #tpu.memory_space<vmem>>, %arg9: memref<1x128xf32, #tpu.memory_space<vmem>>, %arg10: memref<128x128xbf16, #tpu.memory_space<vmem>>) attributes {dimension_semantics = [#tpu.dimension_semantics<parallel>], iteration_bounds = array<i64: 2>, scalar_prefetch = 0 : i64, scratch_operands = 0 : i64, tpu.core_type = #tpu.core_type<tc>, window_params = [{transform_indices = @transform_0, window_bounds = array<i64: 128, 128>}, {pipeline_mode = #tpu.pipeline_mode<synchronous>, transform_indices = @transform_1, window_bounds = array<i64: 128, 128>}, {pipeline_mode = #tpu.pipeline_mode<synchronous>, transform_indices = @transform_2, window_bounds = array<i64: 1, 128>}, {pipeline_mode = #tpu.pipeline_mode<synchronous>, transform_indices = @transform_3, window_bounds = array<i64: 1, 128>}, {pipeline_mode = #tpu.pipeline_mode<synchronous>, transform_indices = @transform_4, window_bounds = array<i64: 1, 128>}, {pipeline_mode = #tpu.pipeline_mode<synchronous>, transform_indices = @transform_5, window_bounds = array<i64: 128, 128>}, {pipeline_mode = #tpu.pipeline_mode<synchronous>, transform_indices = @transform_6, window_bounds = array<i64: 1, 128>}, {pipeline_mode = #tpu.pipeline_mode<synchronous>, transform_indices = @transform_7, window_bounds = array<i64: 1, 128>}, {pipeline_mode = #tpu.pipeline_mode<synchronous>, transform_indices = @transform_8, window_bounds = array<i64: 1, 128>}, {transform_indices = @transform_9, window_bounds = array<i64: 128, 128>}]} {
    %c0 = arith.constant 0 : index
    %c0_0 = arith.constant 0 : index
    %0 = vector.load %arg1[%c0, %c0_0] : memref<128x128xbf16, #tpu.memory_space<vmem>>, vector<128x128xbf16>
    %c0_1 = arith.constant 0 : index
    %c0_2 = arith.constant 0 : index
    %1 = vector.load %arg2[%c0_1, %c0_2] : memref<128x128xbf16, #tpu.memory_space<vmem>>, vector<128x128xbf16>
    %cst = arith.constant dense<0.000000e+00> : vector<128x128xf32>
    %2 = tpu.matmul %0, %1, %cst {dimension_numbers = #tpu.dot_dimension_numbers<[1], [0], [0], [1], [0, 0, 1, 1], [], []>} : vector<128x128xbf16>, vector<128x128xbf16>, vector<128x128xf32> -> vector<128x128xf32>
    %c0_3 = arith.constant 0 : index
    %c0_4 = arith.constant 0 : index
    %3 = vector.load %arg3[%c0_3, %c0_4] : memref<1x128xf32, #tpu.memory_space<vmem>>, vector<1x128xf32>
    %4 = vector.broadcast %3 : vector<1x128xf32> to vector<128x128xf32>
    %5 = arith.addf %2, %4 : vector<128x128xf32>
    %cst_5 = arith.constant 0.000000e+00 : f32
    %6 = vector.broadcast %cst_5 : f32 to vector<128x128xf32>
    %7 = arith.maximumf %5, %6 : vector<128x128xf32>
    %c0_6 = arith.constant 0 : index
    %c0_7 = arith.constant 0 : index
    %8 = vector.load %arg4[%c0_6, %c0_7] : memref<1x128xf32, #tpu.memory_space<vmem>>, vector<1x128xf32>
    %c0_8 = arith.constant 0 : index
    %c0_9 = arith.constant 0 : index
    %9 = vector.load %arg5[%c0_8, %c0_9] : memref<1x128xf32, #tpu.memory_space<vmem>>, vector<1x128xf32>
    %cst_10 = arith.constant dense<0.000000e+00> : vector<128xf32>
    %10 = vector.multi_reduction <add>, %7, %cst_10 [1] : vector<128x128xf32> to vector<128xf32>
    %11 = vector.shape_cast %10 : vector<128xf32> to vector<128x1xf32>
    %cst_11 = arith.constant 1.280000e+02 : f32
    %12 = vector.broadcast %cst_11 : f32 to vector<128x1xf32>
    %13 = arith.divf %11, %12 : vector<128x1xf32>
    %14 = vector.broadcast %13 : vector<128x1xf32> to vector<128x128xf32>
    %15 = arith.subf %7, %14 : vector<128x128xf32>
    %16 = vector.broadcast %13 : vector<128x1xf32> to vector<128x128xf32>
    %17 = arith.subf %7, %16 : vector<128x128xf32>
    %18 = arith.mulf %15, %17 : vector<128x128xf32>
    %cst_12 = arith.constant dense<0.000000e+00> : vector<128xf32>
    %19 = vector.multi_reduction <add>, %18, %cst_12 [1] : vector<128x128xf32> to vector<128xf32>
    %20 = vector.shape_cast %19 : vector<128xf32> to vector<128x1xf32>
    %cst_13 = arith.constant 1.280000e+02 : f32
    %21 = vector.broadcast %cst_13 : f32 to vector<128x1xf32>
    %22 = arith.divf %20, %21 : vector<128x1xf32>
    %23 = vector.broadcast %13 : vector<128x1xf32> to vector<128x128xf32>
    %24 = arith.subf %7, %23 : vector<128x128xf32>
    %cst_14 = arith.constant 9.99999974E-6 : f32
    %25 = vector.broadcast %cst_14 : f32 to vector<128x1xf32>
    %26 = arith.addf %22, %25 : vector<128x1xf32>
    %27 = math.rsqrt %26 : vector<128x1xf32>
    %28 = vector.broadcast %27 : vector<128x1xf32> to vector<128x128xf32>
    %29 = arith.mulf %24, %28 : vector<128x128xf32>
    %30 = vector.broadcast %8 : vector<1x128xf32> to vector<128x128xf32>
    %31 = arith.mulf %29, %30 : vector<128x128xf32>
    %32 = vector.broadcast %9 : vector<1x128xf32> to vector<128x128xf32>
    %33 = arith.addf %31, %32 : vector<128x128xf32>
    %34 = arith.truncf %33 : vector<128x128xf32> to vector<128x128xbf16>
    %c0_15 = arith.constant 0 : index
    %c0_16 = arith.constant 0 : index
    %35 = vector.load %arg6[%c0_15, %c0_16] : memref<128x128xbf16, #tpu.memory_space<vmem>>, vector<128x128xbf16>
    %cst_17 = arith.constant dense<0.000000e+00> : vector<128x128xf32>
    %36 = tpu.matmul %34, %35, %cst_17 {dimension_numbers = #tpu.dot_dimension_numbers<[1], [0], [0], [1], [0, 0, 1, 1], [], []>} : vector<128x128xbf16>, vector<128x128xbf16>, vector<128x128xf32> -> vector<128x128xf32>
    %c0_18 = arith.constant 0 : index
    %c0_19 = arith.constant 0 : index
    %37 = vector.load %arg7[%c0_18, %c0_19] : memref<1x128xf32, #tpu.memory_space<vmem>>, vector<1x128xf32>
    %38 = vector.broadcast %37 : vector<1x128xf32> to vector<128x128xf32>
    %39 = arith.addf %36, %38 : vector<128x128xf32>
    %cst_20 = arith.constant 0.000000e+00 : f32
    %40 = vector.broadcast %cst_20 : f32 to vector<128x128xf32>
    %41 = arith.maximumf %39, %40 : vector<128x128xf32>
    %c0_21 = arith.constant 0 : index
    %c0_22 = arith.constant 0 : index
    %42 = vector.load %arg8[%c0_21, %c0_22] : memref<1x128xf32, #tpu.memory_space<vmem>>, vector<1x128xf32>
    %c0_23 = arith.constant 0 : index
    %c0_24 = arith.constant 0 : index
    %43 = vector.load %arg9[%c0_23, %c0_24] : memref<1x128xf32, #tpu.memory_space<vmem>>, vector<1x128xf32>
    %cst_25 = arith.constant dense<0.000000e+00> : vector<128xf32>
    %44 = vector.multi_reduction <add>, %41, %cst_25 [1] : vector<128x128xf32> to vector<128xf32>
    %45 = vector.shape_cast %44 : vector<128xf32> to vector<128x1xf32>
    %cst_26 = arith.constant 1.280000e+02 : f32
    %46 = vector.broadcast %cst_26 : f32 to vector<128x1xf32>
    %47 = arith.divf %45, %46 : vector<128x1xf32>
    %48 = vector.broadcast %47 : vector<128x1xf32> to vector<128x128xf32>
    %49 = arith.subf %41, %48 : vector<128x128xf32>
    %50 = vector.broadcast %47 : vector<128x1xf32> to vector<128x128xf32>
    %51 = arith.subf %41, %50 : vector<128x128xf32>
    %52 = arith.mulf %49, %51 : vector<128x128xf32>
    %cst_27 = arith.constant dense<0.000000e+00> : vector<128xf32>
    %53 = vector.multi_reduction <add>, %52, %cst_27 [1] : vector<128x128xf32> to vector<128xf32>
    %54 = vector.shape_cast %53 : vector<128xf32> to vector<128x1xf32>
    %cst_28 = arith.constant 1.280000e+02 : f32
    %55 = vector.broadcast %cst_28 : f32 to vector<128x1xf32>
    %56 = arith.divf %54, %55 : vector<128x1xf32>
    %57 = vector.broadcast %47 : vector<128x1xf32> to vector<128x128xf32>
    %58 = arith.subf %41, %57 : vector<128x128xf32>
    %cst_29 = arith.constant 9.99999974E-6 : f32
    %59 = vector.broadcast %cst_29 : f32 to vector<128x1xf32>
    %60 = arith.addf %56, %59 : vector<128x1xf32>
    %61 = math.rsqrt %60 : vector<128x1xf32>
    %62 = vector.broadcast %61 : vector<128x1xf32> to vector<128x128xf32>
    %63 = arith.mulf %58, %62 : vector<128x128xf32>
    %64 = vector.broadcast %42 : vector<1x128xf32> to vector<128x128xf32>
    %65 = arith.mulf %63, %64 : vector<128x128xf32>
    %66 = vector.broadcast %43 : vector<1x128xf32> to vector<128x128xf32>
    %67 = arith.addf %65, %66 : vector<128x128xf32>
    %68 = arith.truncf %67 : vector<128x128xf32> to vector<128x128xbf16>
    %c0_30 = arith.constant 0 : index
    %c0_31 = arith.constant 0 : index
    %69 = vector.load %arg10[%c0_30, %c0_31] : memref<128x128xbf16, #tpu.memory_space<vmem>>, vector<128x128xbf16>
    tpu.vector_store %arg10[%c0_30, %c0_31], %68 {strides = array<i32>} : memref<128x128xbf16, #tpu.memory_space<vmem>>, vector<128x128xbf16>,
    return
  }
  func.func @transform_0(%arg0: i32) -> (i32, i32) {
    %c0_i32 = arith.constant 0 : i32
    %c0_i32_0 = arith.constant 0 : i32
    return %arg0, %c0_i32 : i32, i32
  }
  func.func @transform_1(%arg0: i32) -> (i32, i32) {
    %c0_i32 = arith.constant 0 : i32
    %c0_i32_0 = arith.constant 0 : i32
    %c0_i32_1 = arith.constant 0 : i32
    return %c0_i32, %c0_i32_0 : i32, i32
  }
  func.func @transform_2(%arg0: i32) -> (i32, i32) {
    %c0_i32 = arith.constant 0 : i32
    %c0_i32_0 = arith.constant 0 : i32
    %c0_i32_1 = arith.constant 0 : i32
    return %c0_i32, %c0_i32_0 : i32, i32
  }
  func.func @transform_3(%arg0: i32) -> (i32, i32) {
    %c0_i32 = arith.constant 0 : i32
    %c0_i32_0 = arith.constant 0 : i32
    %c0_i32_1 = arith.constant 0 : i32
    return %c0_i32, %c0_i32_0 : i32, i32
  }
  func.func @transform_4(%arg0: i32) -> (i32, i32) {
    %c0_i32 = arith.constant 0 : i32
    %c0_i32_0 = arith.constant 0 : i32
    %c0_i32_1 = arith.constant 0 : i32
    return %c0_i32, %c0_i32_0 : i32, i32
  }
  func.func @transform_5(%arg0: i32) -> (i32, i32) {
    %c0_i32 = arith.constant 0 : i32
    %c0_i32_0 = arith.constant 0 : i32
    %c0_i32_1 = arith.constant 0 : i32
    return %c0_i32, %c0_i32_0 : i32, i32
  }
  func.func @transform_6(%arg0: i32) -> (i32, i32) {
    %c0_i32 = arith.constant 0 : i32
    %c0_i32_0 = arith.constant 0 : i32
    %c0_i32_1 = arith.constant 0 : i32
    return %c0_i32, %c0_i32_0 : i32, i32
  }
  func.func @transform_7(%arg0: i32) -> (i32, i32) {
    %c0_i32 = arith.constant 0 : i32
    %c0_i32_0 = arith.constant 0 : i32
    %c0_i32_1 = arith.constant 0 : i32
    return %c0_i32, %c0_i32_0 : i32, i32
  }
  func.func @transform_8(%arg0: i32) -> (i32, i32) {
    %c0_i32 = arith.constant 0 : i32
    %c0_i32_0 = arith.constant 0 : i32
    %c0_i32_1 = arith.constant 0 : i32
    return %c0_i32, %c0_i32_0 : i32, i32
  }
  func.func @transform_9(%arg0: i32) -> (i32, i32) {
    %c0_i32 = arith.constant 0 : i32
    %c0_i32_0 = arith.constant 0 : i32
    return %arg0, %c0_i32 : i32, i32
  }
}

</mosaic_0001>

<llo_original>
// kernel: tpu_custom_call.1
$region0: #{tpu_custom_call.1}
  #allocation0 [shape = 'u32[]', space=smem, size = 0x4, offset = 0x4, fixed_abs, tag = 'smem constant byte address 0x4 - core index']
  #allocation1 [shape = 'u32[72,128]{1,0:T(1,128)}', space=vmem, size = 0x9000, scoped, tag = 'internal scratch']
  %s0 = inlined_call_operand.hbm [shape: bf16[256,128], index: 0, kind: input, shape index: {}]
  %s1 = inlined_call_operand.hbm [shape: bf16[128,128], index: 1, kind: input, shape index: {}]
  %s2 = inlined_call_operand.vmem [shape: f32[1,128], index: 2, kind: input, shape index: {}]
  %s3 = inlined_call_operand.vmem [shape: f32[1,128], index: 3, kind: input, shape index: {}]
  %s4 = inlined_call_operand.vmem [shape: f32[1,128], index: 4, kind: input, shape index: {}]
  %s5 = inlined_call_operand.hbm [shape: bf16[128,128], index: 5, kind: input, shape index: {}]
  %s6 = inlined_call_operand.vmem [shape: f32[1,128], index: 6, kind: input, shape index: {}]
  %s7 = inlined_call_operand.vmem [shape: f32[1,128], index: 7, kind: input, shape index: {}]
  %s8 = inlined_call_operand.vmem [shape: f32[1,128], index: 8, kind: input, shape index: {}]
  %s9 = inlined_call_operand.hbm [shape: bf16[256,128], index: 9, kind: output, shape index: {}]
  %s10 = sld [smem:[#allocation0]]
  $region81: #{tpu_custom_call.1} parent=0
    _
  %s12 = ssub.s32 1, %s10
  %s13 = scalar_select 0, %s12, %s10
  $region1: #{tpu_custom_call.1} parent=0
    #allocation2 [shape = 'u8[65536]{0}', space=vmem, size = 0x10000, scoped, tag = 'input window, operand 0']
    #allocation3 [shape = 's32[2]{0}', space=sflag, size = 0x8, scoped, tag = 'scoped memory for tpu_custom_call.1']
    #allocation4 [shape = 's32[2]{0}', space=sflag, size = 0x8, scoped, tag = 'scoped memory for tpu_custom_call.1']
    #allocation5 [shape = 'u8[32768]{0}', space=vmem, size = 0x8000, scoped, tag = 'input window, operand 1, single buffered']
    #allocation6 [shape = 's32[1]{0}', space=sflag, size = 0x4, scoped, tag = 'scoped memory for tpu_custom_call.1']
    #allocation7 [shape = 'u8[32768]{0}', space=vmem, size = 0x8000, scoped, tag = 'input window, operand 5, single buffered']
    #allocation8 [shape = 'u8[65536]{0}', space=vmem, size = 0x10000, scoped, tag = 'output window, operand 0']
    %14 = vsyncpa [#allocation3], 0
    %s15 = scalar_lea.sflag [#allocation3], 1
    %16 = vsyncpa %s15, 0
    %17 = vsyncpa [#allocation6], 0
    %18 = vsyncpa [#allocation4], 0
    %s19 = scalar_lea.sflag [#allocation4], 1
    %20 = vsyncpa %s19, 0
    loop: start=0, step=1, limit=4
    $region2: #{tpu_custom_call.1} parent=1 // loop_pre_header
      _
    $region3: #{tpu_custom_call.1} parent=1 // loop_header
      %s22 = sphi 0, %s26
      %p23 = scmp.ge.s32.totalorder %s22, 4
      %s32 = sphi 0, %s34
      %s35 = sphi 0, %s32
      %s36 = sphi 0, %s35
      %s52 = sphi 0, %s36
      %s56 = sphi 0, %s56
      %s58 = sphi 0, %s56
      %s59 = sphi 0, %s58
      %s73 = sphi 0, %s59
      %s77 = sphi 0, %s77
      %s79 = sphi 0, %s77
      %s80 = sphi 0, %s79
      %s94 = sphi 0, %s80
      %s98 = sphi 0, %s98
      %s100 = sphi 0, %s98
      %s101 = sphi 0, %s100
      %s115 = sphi 0, %s101
      %s119 = sphi 0, %s119
      %s121 = sphi 0, %s119
      %s122 = sphi 0, %s121
      %s136 = sphi 0, %s122
      %s140 = sphi 0, %s140
      %s142 = sphi 0, %s140
      %s143 = sphi 0, %s142
      %s157 = sphi 0, %s143
      %s161 = sphi 0, %s161
      %s163 = sphi 0, %s161
      %s164 = sphi 0, %s163
      %s178 = sphi 0, %s164
      %s182 = sphi 0, %s182
      %s184 = sphi 0, %s182
      %s185 = sphi 0, %s184
      %s199 = sphi 0, %s185
      %s203 = sphi 0, %s203
      %s205 = sphi 0, %s203
      %s206 = sphi 0, %s205
      %s220 = sphi 0, %s206
      %s226 = sphi 0, %s228
      %s229 = sphi 0, %s226
      %s230 = sphi 0, %s229
      %s246 = sphi 0, %s230
    $region4: #{tpu_custom_call.1} parent=1 // loop_header_branch
      %25 = sbr.rel (%p23) target = $region8
    $region5: #{tpu_custom_call.1} parent=1 // loop_body
      %s27 = ssub.s32 %s22, 1
      %s28 = ssub.s32 %s22, 2
      %s29 = sadd.s32 %s22, 1
      %s30 = ssub.s32 %s22, %s29
      %p31 = scmp.eq.s32.totalorder %s30, 0
      %s33 = sadd.s32 %s32, 1
      %s34 = scalar_select %p31, %s32, %s33
      %p37 = pneg %p31
      %p38 = scmp.eq.s32.totalorder %s22, 1
      %p39 = por %p37, %p38
      %p40 = scmp.ne.s32.totalorder %s32, %s35
      %p41 = scmp.eq.s32.totalorder %s22, 0
      %p42 = por %p40, %p41
      %p43 = scmp.ne.s32.totalorder %s32, %s35
      %p44 = scmp.eq.s32.totalorder %s27, 1
      %p45 = por %p43, %p44
      %p46 = scmp.ne.s32.totalorder %s35, %s36
      %p47 = scmp.eq.s32.totalorder %s27, 0
      %p48 = por %p46, %p47
      %p49 = scmp.ne.s32.totalorder %s35, %s36
      %p50 = scmp.eq.s32.totalorder %s28, 1
      %p51 = por %p49, %p50
      %p53 = scmp.ne.s32.totalorder %s36, %s52
      %p54 = scmp.eq.s32.totalorder %s28, 0
      %p55 = por %p53, %p54
      %s57 = sadd.s32 %s56, 1
      %p60 = scmp.eq.s32.totalorder %s22, 1
      %p61 = scmp.ne.s32.totalorder %s56, %s58
      %p62 = scmp.eq.s32.totalorder %s22, 0
      %p63 = por %p61, %p62
      %p64 = scmp.ne.s32.totalorder %s56, %s58
      %p65 = scmp.eq.s32.totalorder %s27, 1
      %p66 = por %p64, %p65
      %p67 = scmp.ne.s32.totalorder %s58, %s59
      %p68 = scmp.eq.s32.totalorder %s27, 0
      %p69 = por %p67, %p68
      %p70 = scmp.ne.s32.totalorder %s58, %s59
      %p71 = scmp.eq.s32.totalorder %s28, 1
      %p72 = por %p70, %p71
      %p74 = scmp.ne.s32.totalorder %s59, %s73
      %p75 = scmp.eq.s32.totalorder %s28, 0
      %p76 = por %p74, %p75
      %s78 = sadd.s32 %s77, 1
      %p81 = scmp.eq.s32.totalorder %s22, 1
      %p82 = scmp.ne.s32.totalorder %s77, %s79
      %p83 = scmp.eq.s32.totalorder %s22, 0
      %p84 = por %p82, %p83
      %p85 = scmp.ne.s32.totalorder %s77, %s79
      %p86 = scmp.eq.s32.totalorder %s27, 1
      %p87 = por %p85, %p86
      %p88 = scmp.ne.s32.totalorder %s79, %s80
      %p89 = scmp.eq.s32.totalorder %s27, 0
      %p90 = por %p88, %p89
      %p91 = scmp.ne.s32.totalorder %s79, %s80
      %p92 = scmp.eq.s32.totalorder %s28, 1
      %p93 = por %p91, %p92
      %p95 = scmp.ne.s32.totalorder %s80, %s94
      %p96 = scmp.eq.s32.totalorder %s28, 0
      %p97 = por %p95, %p96
      %s99 = sadd.s32 %s98, 1
      %p102 = scmp.eq.s32.totalorder %s22, 1
      %p103 = scmp.ne.s32.totalorder %s98, %s100
      %p104 = scmp.eq.s32.totalorder %s22, 0
      %p105 = por %p103, %p104
      %p106 = scmp.ne.s32.totalorder %s98, %s100
      %p107 = scmp.eq.s32.totalorder %s27, 1
      %p108 = por %p106, %p107
      %p109 = scmp.ne.s32.totalorder %s100, %s101
      %p110 = scmp.eq.s32.totalorder %s27, 0
      %p111 = por %p109, %p110
      %p112 = scmp.ne.s32.totalorder %s100, %s101
      %p113 = scmp.eq.s32.totalorder %s28, 1
      %p114 = por %p112, %p113
      %p116 = scmp.ne.s32.totalorder %s101, %s115
      %p117 = scmp.eq.s32.totalorder %s28, 0
      %p118 = por %p116, %p117
      %s120 = sadd.s32 %s119, 1
      %p123 = scmp.eq.s32.totalorder %s22, 1
      %p124 = scmp.ne.s32.totalorder %s119, %s121
      %p125 = scmp.eq.s32.totalorder %s22, 0
      %p126 = por %p124, %p125
      %p127 = scmp.ne.s32.totalorder %s119, %s121
      %p128 = scmp.eq.s32.totalorder %s27, 1
      %p129 = por %p127, %p128
      %p130 = scmp.ne.s32.totalorder %s121, %s122
      %p131 = scmp.eq.s32.totalorder %s27, 0
      %p132 = por %p130, %p131
      %p133 = scmp.ne.s32.totalorder %s121, %s122
      %p134 = scmp.eq.s32.totalorder %s28, 1
      %p135 = por %p133, %p134
      %p137 = scmp.ne.s32.totalorder %s122, %s136
      %p138 = scmp.eq.s32.totalorder %s28, 0
      %p139 = por %p137, %p138
      %s141 = sadd.s32 %s140, 1
      %p144 = scmp.eq.s32.totalorder %s22, 1
      %p145 = scmp.ne.s32.totalorder %s140, %s142
      %p146 = scmp.eq.s32.totalorder %s22, 0
      %p147 = por %p145, %p146
      %p148 = scmp.ne.s32.totalorder %s140, %s142
      %p149 = scmp.eq.s32.totalorder %s27, 1
      %p150 = por %p148, %p149
      %p151 = scmp.ne.s32.totalorder %s142, %s143
      %p152 = scmp.eq.s32.totalorder %s27, 0
      %p153 = por %p151, %p152
      %p154 = scmp.ne.s32.totalorder %s142, %s143
      %p155 = scmp.eq.s32.totalorder %s28, 1
      %p156 = por %p154, %p155
      %p158 = scmp.ne.s32.totalorder %s143, %s157
      %p159 = scmp.eq.s32.totalorder %s28, 0
      %p160 = por %p158, %p159
      %s162 = sadd.s32 %s161, 1
      %p165 = scmp.eq.s32.totalorder %s22, 1
      %p166 = scmp.ne.s32.totalorder %s161, %s163
      %p167 = scmp.eq.s32.totalorder %s22, 0
      %p168 = por %p166, %p167
      %p169 = scmp.ne.s32.totalorder %s161, %s163
      %p170 = scmp.eq.s32.totalorder %s27, 1
      %p171 = por %p169, %p170
      %p172 = scmp.ne.s32.totalorder %s163, %s164
      %p173 = scmp.eq.s32.totalorder %s27, 0
      %p174 = por %p172, %p173
      %p175 = scmp.ne.s32.totalorder %s163, %s164
      %p176 = scmp.eq.s32.totalorder %s28, 1
      %p177 = por %p175, %p176
      %p179 = scmp.ne.s32.totalorder %s164, %s178
      %p180 = scmp.eq.s32.totalorder %s28, 0
      %p181 = por %p179, %p180
      %s183 = sadd.s32 %s182, 1
      %p186 = scmp.eq.s32.totalorder %s22, 1
      %p187 = scmp.ne.s32.totalorder %s182, %s184
      %p188 = scmp.eq.s32.totalorder %s22, 0
      %p189 = por %p187, %p188
      %p190 = scmp.ne.s32.totalorder %s182, %s184
      %p191 = scmp.eq.s32.totalorder %s27, 1
      %p192 = por %p190, %p191
      %p193 = scmp.ne.s32.totalorder %s184, %s185
      %p194 = scmp.eq.s32.totalorder %s27, 0
      %p195 = por %p193, %p194
      %p196 = scmp.ne.s32.totalorder %s184, %s185
      %p197 = scmp.eq.s32.totalorder %s28, 1
      %p198 = por %p196, %p197
      %p200 = scmp.ne.s32.totalorder %s185, %s199
      %p201 = scmp.eq.s32.totalorder %s28, 0
      %p202 = por %p200, %p201
      %s204 = sadd.s32 %s203, 1
      %p207 = scmp.eq.s32.totalorder %s22, 1
      %p208 = scmp.ne.s32.totalorder %s203, %s205
      %p209 = scmp.eq.s32.totalorder %s22, 0
      %p210 = por %p208, %p209
      %p211 = scmp.ne.s32.totalorder %s203, %s205
      %p212 = scmp.eq.s32.totalorder %s27, 1
      %p213 = por %p211, %p212
      %p214 = scmp.ne.s32.totalorder %s205, %s206
      %p215 = scmp.eq.s32.totalorder %s27, 0
      %p216 = por %p214, %p215
      %p217 = scmp.ne.s32.totalorder %s205, %s206
      %p218 = scmp.eq.s32.totalorder %s28, 1
      %p219 = por %p217, %p218
      %p221 = scmp.ne.s32.totalorder %s206, %s220
      %p222 = scmp.eq.s32.totalorder %s28, 0
      %p223 = por %p221, %p222
      %s224 = ssub.s32 %s22, %s29
      %p225 = scmp.eq.s32.totalorder %s224, 0
      %s227 = sadd.s32 %s226, 1
      %s228 = scalar_select %p225, %s226, %s227
      %p231 = pneg %p225
      %p232 = scmp.eq.s32.totalorder %s22, 1
      %p233 = por %p231, %p232
      %p234 = scmp.ne.s32.totalorder %s226, %s229
      %p235 = scmp.eq.s32.totalorder %s22, 0
      %p236 = por %p234, %p235
      %p237 = scmp.ne.s32.totalorder %s226, %s229
      %p238 = scmp.eq.s32.totalorder %s27, 1
      %p239 = por %p237, %p238
      %p240 = scmp.ne.s32.totalorder %s229, %s230
      %p241 = scmp.eq.s32.totalorder %s27, 0
      %p242 = por %p240, %p241
      %p243 = scmp.ne.s32.totalorder %s229, %s230
      %p244 = scmp.eq.s32.totalorder %s28, 1
      %p245 = por %p243, %p244
      %p247 = scmp.ne.s32.totalorder %s230, %s246
      %p248 = scmp.eq.s32.totalorder %s28, 0
      %p249 = por %p247, %p248
      %p250 = scmp.le.s32.totalorder 1, %s22
      %p251 = scmp.lt.s32.totalorder %s22, 3
      %p252 = pnand %p250, %p251
      %p253 = pneg %p252
      // Predicated region
      $region9: #{tpu_custom_call.1} parent=5 // pred_check
        _
      $region10: #{tpu_custom_call.1} parent=5 // pred_check_branch
        %255 = sbr.rel (%p252) target = $region12
      $region11: #{tpu_custom_call.1} parent=5 // pred_region
        %s256 = ssub.s32 %s22, 1
        // Predicated region
        $region13: #{tpu_custom_call.1} parent=11 // pred_check
          %p257 = pneg %p69
        $region14: #{tpu_custom_call.1} parent=11 // pred_check_branch
          %259 = sbr.rel (%p257) target = $region16
        $region15: #{tpu_custom_call.1} parent=11 // pred_region
          %261 = vsyncadd [#allocation6], 0
          %s262 = sshll.u32 %s1, 4
          %s263 = int_to_ptr.hbm [resolvable:$true] %s262
          %s264 = sshll.u32 [#allocation5], 4
          %s265 = int_to_ptr.vmem [resolvable:$true] %s264
          %270 = dma.hbm_to_vmem [thread:$0]  %s263, 1024, %s265, [#allocation6], 64, 64, 4
        $region16: #{tpu_custom_call.1} parent=11 // pred_fallthru
          _
        // Predicated region
        $region17: #{tpu_custom_call.1} parent=11 // pred_check
          %p271 = pneg %p90
        $region18: #{tpu_custom_call.1} parent=11 // pred_check_branch
          %273 = sbr.rel (%p271) target = $region20
        $region19: #{tpu_custom_call.1} parent=11 // pred_region
          _
        $region20: #{tpu_custom_call.1} parent=11 // pred_fallthru
          _
        // Predicated region
        $region21: #{tpu_custom_call.1} parent=11 // pred_check
          %p274 = pneg %p111
        $region22: #{tpu_custom_call.1} parent=11 // pred_check_branch
          %276 = sbr.rel (%p274) target = $region24
        $region23: #{tpu_custom_call.1} parent=11 // pred_region
          _
        $region24: #{tpu_custom_call.1} parent=11 // pred_fallthru
          _
        // Predicated region
        $region25: #{tpu_custom_call.1} parent=11 // pred_check
          %p277 = pneg %p132
        $region26: #{tpu_custom_call.1} parent=11 // pred_check_branch
          %279 = sbr.rel (%p277) target = $region28
        $region27: #{tpu_custom_call.1} parent=11 // pred_region
          _
        $region28: #{tpu_custom_call.1} parent=11 // pred_fallthru
          _
        // Predicated region
        $region29: #{tpu_custom_call.1} parent=11 // pred_check
          %p280 = pneg %p153
        $region30: #{tpu_custom_call.1} parent=11 // pred_check_branch
          %282 = sbr.rel (%p280) target = $region32
        $region31: #{tpu_custom_call.1} parent=11 // pred_region
          %284 = vsyncadd [#allocation6], 0
          %s285 = sshll.u32 %s5, 4
          %s286 = int_to_ptr.hbm [resolvable:$true] %s285
          %s287 = sshll.u32 [#allocation7], 4
          %s288 = int_to_ptr.vmem [resolvable:$true] %s287
          %293 = dma.hbm_to_vmem [thread:$0]  %s286, 1024, %s288, [#allocation6], 64, 64, 4
        $region32: #{tpu_custom_call.1} parent=11 // pred_fallthru
          _
        // Predicated region
        $region33: #{tpu_custom_call.1} parent=11 // pred_check
          %p294 = pneg %p174
        $region34: #{tpu_custom_call.1} parent=11 // pred_check_branch
          %296 = sbr.rel (%p294) target = $region36
        $region35: #{tpu_custom_call.1} parent=11 // pred_region
          _
        $region36: #{tpu_custom_call.1} parent=11 // pred_fallthru
          _
        // Predicated region
        $region37: #{tpu_custom_call.1} parent=11 // pred_check
          %p297 = pneg %p195
        $region38: #{tpu_custom_call.1} parent=11 // pred_check_branch
          %299 = sbr.rel (%p297) target = $region40
        $region39: #{tpu_custom_call.1} parent=11 // pred_region
          _
        $region40: #{tpu_custom_call.1} parent=11 // pred_fallthru
          _
        // Predicated region
        $region41: #{tpu_custom_call.1} parent=11 // pred_check
          %p300 = pneg %p216
        $region42: #{tpu_custom_call.1} parent=11 // pred_check_branch
          %302 = sbr.rel (%p300) target = $region44
        $region43: #{tpu_custom_call.1} parent=11 // pred_region
          _
        $region44: #{tpu_custom_call.1} parent=11 // pred_fallthru
          _
      $region12: #{tpu_custom_call.1} parent=5 // pred_fallthru
        _
      %p303 = scmp.lt.s32.totalorder %s22, 2
      // Predicated region
      $region45: #{tpu_custom_call.1} parent=5 // pred_check
        %p304 = pneg %p303
      $region46: #{tpu_custom_call.1} parent=5 // pred_check_branch
        %306 = sbr.rel (%p304) target = $region48
      $region47: #{tpu_custom_call.1} parent=5 // pred_region
        // Predicated region
        $region49: #{tpu_custom_call.1} parent=47 // pred_check
          %p307 = pneg %p42
        $region50: #{tpu_custom_call.1} parent=47 // pred_check_branch
          %309 = sbr.rel (%p307) target = $region52
        $region51: #{tpu_custom_call.1} parent=47 // pred_region
          %s310 = sand.u32 %s32, 1
          %s311 = scalar_lea.sflag [#allocation3], %s310
          %s312 = sand.u32 %s32, 1
          %s313 = smul.addr %s312, 64
          %s314 = scalar_lea.vmem [#allocation2], %s313
          %s315 = smul.u32 16, %s22
          %317 = vsyncadd %s311, 0
          %s318 = smul.addr %s315, 4
          %s319 = scalar_lea.hbm %s0, %s318
          %s320 = sshll.u32 %s319, 4
          %s321 = int_to_ptr.hbm [resolvable:$true] %s320
          %s322 = sshll.u32 %s314, 4
          %s323 = int_to_ptr.vmem [resolvable:$true] %s322
          %328 = dma.hbm_to_vmem [thread:$0]  %s321, 1024, %s323, %s311, 64, 64, 4
        $region52: #{tpu_custom_call.1} parent=47 // pred_fallthru
          _
      $region48: #{tpu_custom_call.1} parent=5 // pred_fallthru
        _
      %p329 = scmp.le.s32.totalorder 1, %s22
      %p330 = scmp.lt.s32.totalorder %s22, 3
      %p331 = pnand %p329, %p330
      %p332 = pneg %p331
      // Predicated region
      $region53: #{tpu_custom_call.1} parent=5 // pred_check
        _
      $region54: #{tpu_custom_call.1} parent=5 // pred_check_branch
        %334 = sbr.rel (%p331) target = $region56
      $region55: #{tpu_custom_call.1} parent=5 // pred_region
        %s335 = ssub.s32 %s22, 1
        %s336 = sand.u32 %s35, 1
        %s337 = scalar_lea.sflag [#allocation3], %s336
        %s338 = sand.u32 %s35, 1
        %s339 = smul.addr %s338, 64
        %s340 = scalar_lea.vmem [#allocation2], %s339
        // Predicated region
        $region57: #{tpu_custom_call.1} parent=55 // pred_check
          %p341 = pneg %p48
        $region58: #{tpu_custom_call.1} parent=55 // pred_check_branch
          %343 = sbr.rel (%p341) target = $region60
        $region59: #{tpu_custom_call.1} parent=55 // pred_region
          %345 = dma.done %s337, 1024
        $region60: #{tpu_custom_call.1} parent=55 // pred_fallthru
          _
        // Predicated region
        $region61: #{tpu_custom_call.1} parent=55 // pred_check
          %p346 = pneg %p69
        $region62: #{tpu_custom_call.1} parent=55 // pred_check_branch
          %348 = sbr.rel (%p346) target = $region64
        $region63: #{tpu_custom_call.1} parent=55 // pred_region
          %350 = dma.done [#allocation6], 1024
        $region64: #{tpu_custom_call.1} parent=55 // pred_fallthru
          _
        // Predicated region
        $region65: #{tpu_custom_call.1} parent=55 // pred_check
          %p351 = pneg %p153
        $region66: #{tpu_custom_call.1} parent=55 // pred_check_branch
          %353 = sbr.rel (%p351) target = $region68
        $region67: #{tpu_custom_call.1} parent=55 // pred_region
          %355 = dma.done [#allocation6], 1024
        $region68: #{tpu_custom_call.1} parent=55 // pred_fallthru
          _
        %s356 = sand.u32 %s35, 1
        %s357 = scalar_lea.sflag [#allocation3], %s356
        %s358 = sand.u32 %s35, 1
        %s359 = smul.addr %s358, 64
        %s360 = scalar_lea.vmem [#allocation2], %s359
        %p361 = pneg %p48
        %p362 = pneg %p45
        %p363 = pneg %p69
        %p364 = pneg %p66
        %p365 = pneg %p90
        %p366 = pneg %p87
        %p367 = pneg %p111
        %p368 = pneg %p108
        %p369 = pneg %p132
        %p370 = pneg %p129
        %p371 = pneg %p153
        %p372 = pneg %p150
        %p373 = pneg %p174
        %p374 = pneg %p171
        %p375 = pneg %p195
        %p376 = pneg %p192
        %p377 = pneg %p216
        %p378 = pneg %p213
        %p379 = pneg %p242
        %p380 = pneg %p239
        %s381 = sand.u32 %s229, 1
        %s382 = scalar_lea.sflag [#allocation4], %s381
        %s383 = sand.u32 %s229, 1
        %s384 = smul.addr %s383, 64
        %s385 = scalar_lea.vmem [#allocation8], %s384
        %s386 = smul.u32 16, %s27
        %s387 = smul.u32 16, %s27
        %v388 = vld [vmem:[%s340] sm:$0xf]
        %v389 = vld [vmem:[%s340 + $0x4] sm:$0xf]
        %v390 = vld [vmem:[%s340 + $0x8] sm:$0xf]
        %v391 = vld [vmem:[%s340 + $0xc] sm:$0xf]
        %v392 = vld [vmem:[%s340 + $0x10] sm:$0xf]
        %v393 = vld [vmem:[%s340 + $0x14] sm:$0xf]
        %v394 = vld [vmem:[%s340 + $0x18] sm:$0xf]
        %v395 = vld [vmem:[%s340 + $0x1c] sm:$0xf]
        %v396 = vld [vmem:[%s340 + $0x20] sm:$0xf]
        %v397 = vld [vmem:[%s340 + $0x24] sm:$0xf]
        %v398 = vld [vmem:[%s340 + $0x28] sm:$0xf]
        %v399 = vld [vmem:[%s340 + $0x2c] sm:$0xf]
        %v400 = vld [vmem:[%s340 + $0x30] sm:$0xf]
        %v401 = vld [vmem:[%s340 + $0x34] sm:$0xf]
        %v402 = vld [vmem:[%s340 + $0x38] sm:$0xf]
        %v403 = vld [vmem:[%s340 + $0x3c] sm:$0xf]
        %v404 = vld [vmem:[#allocation5] sm:$0xf]
        %v405 = vld [vmem:[#allocation5 + $0x4] sm:$0xf]
        %v406 = vld [vmem:[#allocation5 + $0x8] sm:$0xf]
        %v407 = vld [vmem:[#allocation5 + $0xc] sm:$0xf]
        %v408 = vld [vmem:[#allocation5 + $0x10] sm:$0xf]
        %v409 = vld [vmem:[#allocation5 + $0x14] sm:$0xf]
        %v410 = vld [vmem:[#allocation5 + $0x18] sm:$0xf]
        %v411 = vld [vmem:[#allocation5 + $0x1c] sm:$0xf]
        %v412 = vld [vmem:[#allocation5 + $0x20] sm:$0xf]
        %v413 = vld [vmem:[#allocation5 + $0x24] sm:$0xf]
        %v414 = vld [vmem:[#allocation5 + $0x28] sm:$0xf]
        %v415 = vld [vmem:[#allocation5 + $0x2c] sm:$0xf]
        %v416 = vld [vmem:[#allocation5 + $0x30] sm:$0xf]
        %v417 = vld [vmem:[#allocation5 + $0x34] sm:$0xf]
        %v418 = vld [vmem:[#allocation5 + $0x38] sm:$0xf]
        %v419 = vld [vmem:[#allocation5 + $0x3c] sm:$0xf]
        %v420 = vld [vmem:[%s2] sm:$0x1]
        %v422 = vperm.slane %v420, 0
        %v440 = vunpack.c.l.b16 %v388
        %v441 = vunpack.c.l.b16 %v389
        %v442 = vunpack.c.l.b16 %v390
        %v443 = vunpack.c.l.b16 %v391
        %v444 = vunpack.c.l.b16 %v392
        %v445 = vunpack.c.l.b16 %v393
        %v446 = vunpack.c.l.b16 %v394
        %v447 = vunpack.c.l.b16 %v395
        %v448 = vunpack.c.l.b16 %v396
        %v449 = vunpack.c.l.b16 %v397
        %v450 = vunpack.c.l.b16 %v398
        %v451 = vunpack.c.l.b16 %v399
        %v452 = vunpack.c.l.b16 %v400
        %v453 = vunpack.c.l.b16 %v401
        %v454 = vunpack.c.l.b16 %v402
        %v455 = vunpack.c.l.b16 %v403
        %v456 = vpack.c.b16 %v441, %v440
        %v457 = vpack.c.b16 %v443, %v442
        %v458 = vpack.c.b16 %v445, %v444
        %v459 = vpack.c.b16 %v447, %v446
        %v460 = vpack.c.b16 %v449, %v448
        %v461 = vpack.c.b16 %v451, %v450
        %v462 = vpack.c.b16 %v453, %v452
        %v463 = vpack.c.b16 %v455, %v454
        %v488 = vunpack.c.l.b16 %v404
        %v489 = vunpack.c.l.b16 %v405
        %v490 = vunpack.c.l.b16 %v406
        %v491 = vunpack.c.l.b16 %v407
        %v492 = vunpack.c.l.b16 %v408
        %v493 = vunpack.c.l.b16 %v409
        %v494 = vunpack.c.l.b16 %v410
        %v495 = vunpack.c.l.b16 %v411
        %v496 = vunpack.c.l.b16 %v412
        %v497 = vunpack.c.l.b16 %v413
        %v498 = vunpack.c.l.b16 %v414
        %v499 = vunpack.c.l.b16 %v415
        %v500 = vunpack.c.l.b16 %v416
        %v501 = vunpack.c.l.b16 %v417
        %v502 = vunpack.c.l.b16 %v418
        %v503 = vunpack.c.l.b16 %v419
        %v504 = vpack.c.b16 %v489, %v488
        %v505 = vpack.c.b16 %v491, %v490
        %v506 = vpack.c.b16 %v493, %v492
        %v507 = vpack.c.b16 %v495, %v494
        %v508 = vpack.c.b16 %v497, %v496
        %v509 = vpack.c.b16 %v499, %v498
        %v510 = vpack.c.b16 %v501, %v500
        %v511 = vpack.c.b16 %v503, %v502
        %520 = vmatpush.bf16.msra.mxu0 %v511
        %521 = vmatpush.bf16.msra.mxu0 %v510
        %522 = vmatpush.bf16.msra.mxu0 %v509
        %523 = vmatpush.bf16.msra.mxu0 %v508
        %524 = vmatpush.bf16.msra.mxu0 %v507
        %525 = vmatpush.bf16.msra.mxu0 %v506
        %526 = vmatpush.bf16.msra.mxu0 %v505
        %527 = vmatpush.bf16.msra.mxu0 %v504
        %528 = vmatmul.bf16.gmra.mxu0 %v456
        %v529 = vpop.f32.mrf.mxu0
        %v530 = vadd.f32 %v422, %v529
        %v531 = vpop.f32.mrf.mxu0
        %v532 = vadd.f32 %v422, %v531
        %533 = vmatmul.bf16.gmra.mxu0 %v457
        %v534 = vpop.f32.mrf.mxu0
        %v535 = vadd.f32 %v422, %v534
        %v536 = vpop.f32.mrf.mxu0
        %v537 = vadd.f32 %v422, %v536
        %538 = vmatmul.bf16.gmra.mxu0 %v458
        %v539 = vpop.f32.mrf.mxu0
        %v540 = vadd.f32 %v422, %v539
        %v541 = vpop.f32.mrf.mxu0
        %v542 = vadd.f32 %v422, %v541
        %543 = vmatmul.bf16.gmra.mxu0 %v459
        %v544 = vpop.f32.mrf.mxu0
        %v545 = vadd.f32 %v422, %v544
        %v546 = vpop.f32.mrf.mxu0
        %v547 = vadd.f32 %v422, %v546
        %548 = vmatmul.bf16.gmra.mxu0 %v460
        %v549 = vpop.f32.mrf.mxu0
        %v550 = vadd.f32 %v422, %v549
        %v551 = vpop.f32.mrf.mxu0
        %v552 = vadd.f32 %v422, %v551
        %553 = vmatmul.bf16.gmra.mxu0 %v461
        %v554 = vpop.f32.mrf.mxu0
        %v555 = vadd.f32 %v422, %v554
        %v556 = vpop.f32.mrf.mxu0
        %v557 = vadd.f32 %v422, %v556
        %558 = vmatmul.bf16.gmra.mxu0 %v462
        %v559 = vpop.f32.mrf.mxu0
        %v560 = vadd.f32 %v422, %v559
        %v561 = vpop.f32.mrf.mxu0
        %v562 = vadd.f32 %v422, %v561
        %563 = vmatmul.bf16.gmra.mxu0 %v463
        %v564 = vpop.f32.mrf.mxu0
        %v565 = vadd.f32 %v422, %v564
        %v566 = vpop.f32.mrf.mxu0
        %v567 = vadd.f32 %v422, %v566
        %568 = vdwg.mxu0
        %v569 = vmax.f32 %v530, 0.0
        %v570 = vmax.f32 %v532, 0.0
        %v571 = vmax.f32 %v535, 0.0
        %v572 = vmax.f32 %v537, 0.0
        %v573 = vmax.f32 %v540, 0.0
        %v574 = vmax.f32 %v542, 0.0
        %v575 = vmax.f32 %v545, 0.0
        %v576 = vmax.f32 %v547, 0.0
        %v577 = vmax.f32 %v550, 0.0
        %v578 = vmax.f32 %v552, 0.0
        %v579 = vmax.f32 %v555, 0.0
        %v580 = vmax.f32 %v557, 0.0
        %v581 = vmax.f32 %v560, 0.0
        %v582 = vmax.f32 %v562, 0.0
        %v583 = vmax.f32 %v565, 0.0
        %v584 = vmax.f32 %v567, 0.0
        %v585 = vld [vmem:[%s3] sm:$0x1]
        %v586 = vld [vmem:[%s4] sm:$0x1]
        %587 = vadd.xlane.f32.xlu0 %v569
        %v588 = vpop.xlane.xlu0 %587
        %589 = vadd.xlane.f32.xlu0 %v570
        %v590 = vpop.xlane.xlu0 %589
        %591 = vadd.xlane.f32.xlu0 %v571
        %v592 = vpop.xlane.xlu0 %591
        %593 = vadd.xlane.f32.xlu0 %v572
        %v594 = vpop.xlane.xlu0 %593
        %595 = vadd.xlane.f32.xlu0 %v573
        %v596 = vpop.xlane.xlu0 %595
        %597 = vadd.xlane.f32.xlu0 %v574
        %v598 = vpop.xlane.xlu0 %597
        %599 = vadd.xlane.f32.xlu0 %v575
        %v600 = vpop.xlane.xlu0 %599
        %601 = vadd.xlane.f32.xlu0 %v576
        %v602 = vpop.xlane.xlu0 %601
        %603 = vadd.xlane.f32.xlu0 %v577
        %v604 = vpop.xlane.xlu0 %603
        %605 = vadd.xlane.f32.xlu0 %v578
        %v606 = vpop.xlane.xlu0 %605
        %607 = vadd.xlane.f32.xlu0 %v579
        %v608 = vpop.xlane.xlu0 %607
        %609 = vadd.xlane.f32.xlu0 %v580
        %v610 = vpop.xlane.xlu0 %609
        %611 = vadd.xlane.f32.xlu0 %v581
        %v612 = vpop.xlane.xlu0 %611
        %613 = vadd.xlane.f32.xlu0 %v582
        %v614 = vpop.xlane.xlu0 %613
        %615 = vadd.xlane.f32.xlu0 %v583
        %v616 = vpop.xlane.xlu0 %615
        %617 = vadd.xlane.f32.xlu0 %v584
        %v618 = vpop.xlane.xlu0 %617
        %v619 = vrcp.pop 128.0
        %v620 = vmul.f32 128.0, %v619
        %v621 = vsub.f32 1.0, %v620
        %v622 = vmul.f32 %v619, %v621
        %v623 = vadd.f32 %v619, %v622
        %vm624 = vweird.f32 %v619
        %v625 = vsel %vm624, %v619, %v623
        %v626 = vmul.f32 %v588, %v625
        %v627 = vmul.f32 %v590, %v625
        %v628 = vmul.f32 %v592, %v625
        %v629 = vmul.f32 %v594, %v625
        %v630 = vmul.f32 %v596, %v625
        %v631 = vmul.f32 %v598, %v625
        %v632 = vmul.f32 %v600, %v625
        %v633 = vmul.f32 %v602, %v625
        %v634 = vmul.f32 %v604, %v625
        %v635 = vmul.f32 %v606, %v625
        %v636 = vmul.f32 %v608, %v625
        %v637 = vmul.f32 %v610, %v625
        %v638 = vmul.f32 %v612, %v625
        %v639 = vmul.f32 %v614, %v625
        %v640 = vmul.f32 %v616, %v625
        %v641 = vmul.f32 %v618, %v625
        %v642 = vsub.f32 %v569, %v626
        %v643 = vsub.f32 %v570, %v627
        %v644 = vsub.f32 %v571, %v628
        %v645 = vsub.f32 %v572, %v629
        %v646 = vsub.f32 %v573, %v630
        %v647 = vsub.f32 %v574, %v631
        %v648 = vsub.f32 %v575, %v632
        %v649 = vsub.f32 %v576, %v633
        %v650 = vsub.f32 %v577, %v634
        %v651 = vsub.f32 %v578, %v635
        %v652 = vsub.f32 %v579, %v636
        %v653 = vsub.f32 %v580, %v637
        %v654 = vsub.f32 %v581, %v638
        %v655 = vsub.f32 %v582, %v639
        %v656 = vsub.f32 %v583, %v640
        %v657 = vsub.f32 %v584, %v641
        %v658 = vmul.f32 %v642, %v642
        %v659 = vmul.f32 %v643, %v643
        %v660 = vmul.f32 %v644, %v644
        %v661 = vmul.f32 %v645, %v645
        %v662 = vmul.f32 %v646, %v646
        %v663 = vmul.f32 %v647, %v647
        %v664 = vmul.f32 %v648, %v648
        %v665 = vmul.f32 %v649, %v649
        %v666 = vmul.f32 %v650, %v650
        %v667 = vmul.f32 %v651, %v651
        %v668 = vmul.f32 %v652, %v652
        %v669 = vmul.f32 %v653, %v653
        %v670 = vmul.f32 %v654, %v654
        %v671 = vmul.f32 %v655, %v655
        %v672 = vmul.f32 %v656, %v656
        %v673 = vmul.f32 %v657, %v657
        %674 = vadd.xlane.f32.xlu0 %v658
        %v675 = vpop.xlane.xlu0 %674
        %676 = vadd.xlane.f32.xlu0 %v659
        %v677 = vpop.xlane.xlu0 %676
        %678 = vadd.xlane.f32.xlu0 %v660
        %v679 = vpop.xlane.xlu0 %678
        %680 = vadd.xlane.f32.xlu0 %v661
        %v681 = vpop.xlane.xlu0 %680
        %682 = vadd.xlane.f32.xlu0 %v662
        %v683 = vpop.xlane.xlu0 %682
        %684 = vadd.xlane.f32.xlu0 %v663
        %v685 = vpop.xlane.xlu0 %684
        %686 = vadd.xlane.f32.xlu0 %v664
        %v687 = vpop.xlane.xlu0 %686
        %688 = vadd.xlane.f32.xlu0 %v665
        %v689 = vpop.xlane.xlu0 %688
        %690 = vadd.xlane.f32.xlu0 %v666
        %v691 = vpop.xlane.xlu0 %690
        %692 = vadd.xlane.f32.xlu0 %v667
        %v693 = vpop.xlane.xlu0 %692
        %694 = vadd.xlane.f32.xlu0 %v668
        %v695 = vpop.xlane.xlu0 %694
        %696 = vadd.xlane.f32.xlu0 %v669
        %v697 = vpop.xlane.xlu0 %696
        %698 = vadd.xlane.f32.xlu0 %v670
        %v699 = vpop.xlane.xlu0 %698
        %700 = vadd.xlane.f32.xlu0 %v671
        %v701 = vpop.xlane.xlu0 %700
        %702 = vadd.xlane.f32.xlu0 %v672
        %v703 = vpop.xlane.xlu0 %702
        %704 = vadd.xlane.f32.xlu0 %v673
        %v705 = vpop.xlane.xlu0 %704
        %v706 = vmul.f32 %v675, %v625
        %v707 = vmul.f32 %v677, %v625
        %v708 = vmul.f32 %v679, %v625
        %v709 = vmul.f32 %v681, %v625
        %v710 = vmul.f32 %v683, %v625
        %v711 = vmul.f32 %v685, %v625
        %v712 = vmul.f32 %v687, %v625
        %v713 = vmul.f32 %v689, %v625
        %v714 = vmul.f32 %v691, %v625
        %v715 = vmul.f32 %v693, %v625
        %v716 = vmul.f32 %v695, %v625
        %v717 = vmul.f32 %v697, %v625
        %v718 = vmul.f32 %v699, %v625
        %v719 = vmul.f32 %v701, %v625
        %v720 = vmul.f32 %v703, %v625
        %v721 = vmul.f32 %v705, %v625
        %v722 = vadd.f32 %v706, 1e-05
        %v723 = vadd.f32 %v707, 1e-05
        %v724 = vadd.f32 %v708, 1e-05
        %v725 = vadd.f32 %v709, 1e-05
        %v726 = vadd.f32 %v710, 1e-05
        %v727 = vadd.f32 %v711, 1e-05
        %v728 = vadd.f32 %v712, 1e-05
        %v729 = vadd.f32 %v713, 1e-05
        %v730 = vadd.f32 %v714, 1e-05
        %v731 = vadd.f32 %v715, 1e-05
        %v732 = vadd.f32 %v716, 1e-05
        %v733 = vadd.f32 %v717, 1e-05
        %v734 = vadd.f32 %v718, 1e-05
        %v735 = vadd.f32 %v719, 1e-05
        %v736 = vadd.f32 %v720, 1e-05
        %v737 = vadd.f32 %v721, 1e-05
        %v738 = vrsqrt.pop %v722
        %v739 = vmul.f32 %v738, %v722
        %v740 = vmul.f32 %v739, %v738
        %v741 = vmul.f32 0.5, %v740
        %v742 = vsub.f32 1.5, %v741
        %v743 = vmul.f32 %v738, %v742
        %vm744 = vweird.f32 %v722
        %vm745 = vweird.f32 %v738
        %vm746 = vmor %vm744, %vm745
        %v747 = vsel %vm746, %v738, %v743
        %v748 = vrsqrt.pop %v723
        %v749 = vmul.f32 %v748, %v723
        %v750 = vmul.f32 %v749, %v748
        %v751 = vmul.f32 0.5, %v750
        %v752 = vsub.f32 1.5, %v751
        %v753 = vmul.f32 %v748, %v752
        %vm754 = vweird.f32 %v723
        %vm755 = vweird.f32 %v748
        %vm756 = vmor %vm754, %vm755
        %v757 = vsel %vm756, %v748, %v753
        %v758 = vrsqrt.pop %v724
        %v759 = vmul.f32 %v758, %v724
        %v760 = vmul.f32 %v759, %v758
        %v761 = vmul.f32 0.5, %v760
        %v762 = vsub.f32 1.5, %v761
        %v763 = vmul.f32 %v758, %v762
        %vm764 = vweird.f32 %v724
        %vm765 = vweird.f32 %v758
        %vm766 = vmor %vm764, %vm765
        %v767 = vsel %vm766, %v758, %v763
        %v768 = vrsqrt.pop %v725
        %v769 = vmul.f32 %v768, %v725
        %v770 = vmul.f32 %v769, %v768
        %v771 = vmul.f32 0.5, %v770
        %v772 = vsub.f32 1.5, %v771
        %v773 = vmul.f32 %v768, %v772
        %vm774 = vweird.f32 %v725
        %vm775 = vweird.f32 %v768
        %vm776 = vmor %vm774, %vm775
        %v777 = vsel %vm776, %v768, %v773
        %v778 = vrsqrt.pop %v726
        %v779 = vmul.f32 %v778, %v726
        %v780 = vmul.f32 %v779, %v778
        %v781 = vmul.f32 0.5, %v780
        %v782 = vsub.f32 1.5, %v781
        %v783 = vmul.f32 %v778, %v782
        %vm784 = vweird.f32 %v726
        %vm785 = vweird.f32 %v778
        %vm786 = vmor %vm784, %vm785
        %v787 = vsel %vm786, %v778, %v783
        %v788 = vrsqrt.pop %v727
        %v789 = vmul.f32 %v788, %v727
        %v790 = vmul.f32 %v789, %v788
        %v791 = vmul.f32 0.5, %v790
        %v792 = vsub.f32 1.5, %v791
        %v793 = vmul.f32 %v788, %v792
        %vm794 = vweird.f32 %v727
        %vm795 = vweird.f32 %v788
        %vm796 = vmor %vm794, %vm795
        %v797 = vsel %vm796, %v788, %v793
        %v798 = vrsqrt.pop %v728
        %v799 = vmul.f32 %v798, %v728
        %v800 = vmul.f32 %v799, %v798
        %v801 = vmul.f32 0.5, %v800
        %v802 = vsub.f32 1.5, %v801
        %v803 = vmul.f32 %v798, %v802
        %vm804 = vweird.f32 %v728
        %vm805 = vweird.f32 %v798
        %vm806 = vmor %vm804, %vm805
        %v807 = vsel %vm806, %v798, %v803
        %v808 = vrsqrt.pop %v729
        %v809 = vmul.f32 %v808, %v729
        %v810 = vmul.f32 %v809, %v808
        %v811 = vmul.f32 0.5, %v810
        %v812 = vsub.f32 1.5, %v811
        %v813 = vmul.f32 %v808, %v812
        %vm814 = vweird.f32 %v729
        %vm815 = vweird.f32 %v808
        %vm816 = vmor %vm814, %vm815
        %v817 = vsel %vm816, %v808, %v813
        %v818 = vrsqrt.pop %v730
        %v819 = vmul.f32 %v818, %v730
        %v820 = vmul.f32 %v819, %v818
        %v821 = vmul.f32 0.5, %v820
        %v822 = vsub.f32 1.5, %v821
        %v823 = vmul.f32 %v818, %v822
        %vm824 = vweird.f32 %v730
        %vm825 = vweird.f32 %v818
        %vm826 = vmor %vm824, %vm825
        %v827 = vsel %vm826, %v818, %v823
        %v828 = vrsqrt.pop %v731
        %v829 = vmul.f32 %v828, %v731
        %v830 = vmul.f32 %v829, %v828
        %v831 = vmul.f32 0.5, %v830
        %v832 = vsub.f32 1.5, %v831
        %v833 = vmul.f32 %v828, %v832
        %vm834 = vweird.f32 %v731
        %vm835 = vweird.f32 %v828
        %vm836 = vmor %vm834, %vm835
        %v837 = vsel %vm836, %v828, %v833
        %v838 = vrsqrt.pop %v732
        %v839 = vmul.f32 %v838, %v732
        %v840 = vmul.f32 %v839, %v838
        %v841 = vmul.f32 0.5, %v840
        %v842 = vsub.f32 1.5, %v841
        %v843 = vmul.f32 %v838, %v842
        %vm844 = vweird.f32 %v732
        %vm845 = vweird.f32 %v838
        %vm846 = vmor %vm844, %vm845
        %v847 = vsel %vm846, %v838, %v843
        %v848 = vrsqrt.pop %v733
        %v849 = vmul.f32 %v848, %v733
        %v850 = vmul.f32 %v849, %v848
        %v851 = vmul.f32 0.5, %v850
        %v852 = vsub.f32 1.5, %v851
        %v853 = vmul.f32 %v848, %v852
        %vm854 = vweird.f32 %v733
        %vm855 = vweird.f32 %v848
        %vm856 = vmor %vm854, %vm855
        %v857 = vsel %vm856, %v848, %v853
        %v858 = vrsqrt.pop %v734
        %v859 = vmul.f32 %v858, %v734
        %v860 = vmul.f32 %v859, %v858
        %v861 = vmul.f32 0.5, %v860
        %v862 = vsub.f32 1.5, %v861
        %v863 = vmul.f32 %v858, %v862
        %vm864 = vweird.f32 %v734
        %vm865 = vweird.f32 %v858
        %vm866 = vmor %vm864, %vm865
        %v867 = vsel %vm866, %v858, %v863
        %v868 = vrsqrt.pop %v735
        %v869 = vmul.f32 %v868, %v735
        %v870 = vmul.f32 %v869, %v868
        %v871 = vmul.f32 0.5, %v870
        %v872 = vsub.f32 1.5, %v871
        %v873 = vmul.f32 %v868, %v872
        %vm874 = vweird.f32 %v735
        %vm875 = vweird.f32 %v868
        %vm876 = vmor %vm874, %vm875
        %v877 = vsel %vm876, %v868, %v873
        %v878 = vrsqrt.pop %v736
        %v879 = vmul.f32 %v878, %v736
        %v880 = vmul.f32 %v879, %v878
        %v881 = vmul.f32 0.5, %v880
        %v882 = vsub.f32 1.5, %v881
        %v883 = vmul.f32 %v878, %v882
        %vm884 = vweird.f32 %v736
        %vm885 = vweird.f32 %v878
        %vm886 = vmor %vm884, %vm885
        %v887 = vsel %vm886, %v878, %v883
        %v888 = vrsqrt.pop %v737
        %v889 = vmul.f32 %v888, %v737
        %v890 = vmul.f32 %v889, %v888
        %v891 = vmul.f32 0.5, %v890
        %v892 = vsub.f32 1.5, %v891
        %v893 = vmul.f32 %v888, %v892
        %vm894 = vweird.f32 %v737
        %vm895 = vweird.f32 %v888
        %vm896 = vmor %vm894, %vm895
        %v897 = vsel %vm896, %v888, %v893
        %v898 = vmul.f32 %v642, %v747
        %v899 = vmul.f32 %v643, %v757
        %v900 = vmul.f32 %v644, %v767
        %v901 = vmul.f32 %v645, %v777
        %v902 = vmul.f32 %v646, %v787
        %v903 = vmul.f32 %v647, %v797
        %v904 = vmul.f32 %v648, %v807
        %v905 = vmul.f32 %v649, %v817
        %v906 = vmul.f32 %v650, %v827
        %v907 = vmul.f32 %v651, %v837
        %v908 = vmul.f32 %v652, %v847
        %v909 = vmul.f32 %v653, %v857
        %v910 = vmul.f32 %v654, %v867
        %v911 = vmul.f32 %v655, %v877
        %v912 = vmul.f32 %v656, %v887
        %v913 = vmul.f32 %v657, %v897
        %v915 = vperm.slane %v585, 0
        %v917 = vmul.f32 %v898, %v915
        %v918 = vmul.f32 %v899, %v915
        %v919 = vmul.f32 %v900, %v915
        %v920 = vmul.f32 %v901, %v915
        %v921 = vmul.f32 %v902, %v915
        %v922 = vmul.f32 %v903, %v915
        %v923 = vmul.f32 %v904, %v915
        %v924 = vmul.f32 %v905, %v915
        %v925 = vmul.f32 %v906, %v915
        %v926 = vmul.f32 %v907, %v915
        %v927 = vmul.f32 %v908, %v915
        %v928 = vmul.f32 %v909, %v915
        %v929 = vmul.f32 %v910, %v915
        %v930 = vmul.f32 %v911, %v915
        %v931 = vmul.f32 %v912, %v915
        %v932 = vmul.f32 %v913, %v915
        %v934 = vperm.slane %v586, 0
        %v936 = vadd.f32 %v917, %v934
        %v937 = vadd.f32 %v918, %v934
        %v938 = vadd.f32 %v919, %v934
        %v939 = vadd.f32 %v920, %v934
        %v940 = vadd.f32 %v921, %v934
        %v941 = vadd.f32 %v922, %v934
        %v942 = vadd.f32 %v923, %v934
        %v943 = vadd.f32 %v924, %v934
        %v944 = vadd.f32 %v925, %v934
        %v945 = vadd.f32 %v926, %v934
        %v946 = vadd.f32 %v927, %v934
        %v947 = vadd.f32 %v928, %v934
        %v948 = vadd.f32 %v929, %v934
        %v949 = vadd.f32 %v930, %v934
        %v950 = vadd.f32 %v931, %v934
        %v951 = vadd.f32 %v932, %v934
        %v952 = vpack.c.bf16 %v937, %v936
        %v953 = vpack.c.bf16 %v939, %v938
        %v954 = vpack.c.bf16 %v941, %v940
        %v955 = vpack.c.bf16 %v943, %v942
        %v956 = vpack.c.bf16 %v945, %v944
        %v957 = vpack.c.bf16 %v947, %v946
        %v958 = vpack.c.bf16 %v949, %v948
        %v959 = vpack.c.bf16 %v951, %v950
        %v960 = vld [vmem:[#allocation7] sm:$0xf]
        %v961 = vld [vmem:[#allocation7 + $0x4] sm:$0xf]
        %v962 = vld [vmem:[#allocation7 + $0x8] sm:$0xf]
        %v963 = vld [vmem:[#allocation7 + $0xc] sm:$0xf]
        %v964 = vld [vmem:[#allocation7 + $0x10] sm:$0xf]
        %v965 = vld [vmem:[#allocation7 + $0x14] sm:$0xf]
        %v966 = vld [vmem:[#allocation7 + $0x18] sm:$0xf]
        %v967 = vld [vmem:[#allocation7 + $0x1c] sm:$0xf]
        %v968 = vld [vmem:[#allocation7 + $0x20] sm:$0xf]
        %v969 = vld [vmem:[#allocation7 + $0x24] sm:$0xf]
        %v970 = vld [vmem:[#allocation7 + $0x28] sm:$0xf]
        %v971 = vld [vmem:[#allocation7 + $0x2c] sm:$0xf]
        %v972 = vld [vmem:[#allocation7 + $0x30] sm:$0xf]
        %v973 = vld [vmem:[#allocation7 + $0x34] sm:$0xf]
        %v974 = vld [vmem:[#allocation7 + $0x38] sm:$0xf]
        %v975 = vld [vmem:[#allocation7 + $0x3c] sm:$0xf]
        %v976 = vld [vmem:[%s6] sm:$0x1]
        %v978 = vperm.slane %v976, 0
        %v996 = vunpack.c.l.b16 %v960
        %v997 = vunpack.c.l.b16 %v961
        %v998 = vunpack.c.l.b16 %v962
        %v999 = vunpack.c.l.b16 %v963
        %v1000 = vunpack.c.l.b16 %v964
        %v1001 = vunpack.c.l.b16 %v965
        %v1002 = vunpack.c.l.b16 %v966
        %v1003 = vunpack.c.l.b16 %v967
        %v1004 = vunpack.c.l.b16 %v968
        %v1005 = vunpack.c.l.b16 %v969
        %v1006 = vunpack.c.l.b16 %v970
        %v1007 = vunpack.c.l.b16 %v971
        %v1008 = vunpack.c.l.b16 %v972
        %v1009 = vunpack.c.l.b16 %v973
        %v1010 = vunpack.c.l.b16 %v974
        %v1011 = vunpack.c.l.b16 %v975
        %v1012 = vpack.c.b16 %v997, %v996
        %v1013 = vpack.c.b16 %v999, %v998
        %v1014 = vpack.c.b16 %v1001, %v1000
        %v1015 = vpack.c.b16 %v1003, %v1002
        %v1016 = vpack.c.b16 %v1005, %v1004
        %v1017 = vpack.c.b16 %v1007, %v1006
        %v1018 = vpack.c.b16 %v1009, %v1008
        %v1019 = vpack.c.b16 %v1011, %v1010
        %1028 = vmatpush.bf16.msra.mxu0 %v1019
        %1029 = vmatpush.bf16.msra.mxu0 %v1018
        %1030 = vmatpush.bf16.msra.mxu0 %v1017
        %1031 = vmatpush.bf16.msra.mxu0 %v1016
        %1032 = vmatpush.bf16.msra.mxu0 %v1015
        %1033 = vmatpush.bf16.msra.mxu0 %v1014
        %1034 = vmatpush.bf16.msra.mxu0 %v1013
        %1035 = vmatpush.bf16.msra.mxu0 %v1012
        %1036 = vmatmul.bf16.gmra.mxu0 %v952
        %v1037 = vpop.f32.mrf.mxu0
        %v1038 = vadd.f32 %v978, %v1037
        %v1039 = vpop.f32.mrf.mxu0
        %v1040 = vadd.f32 %v978, %v1039
        %1041 = vmatmul.bf16.gmra.mxu0 %v953
        %v1042 = vpop.f32.mrf.mxu0
        %v1043 = vadd.f32 %v978, %v1042
        %v1044 = vpop.f32.mrf.mxu0
        %v1045 = vadd.f32 %v978, %v1044
        %1046 = vmatmul.bf16.gmra.mxu0 %v954
        %v1047 = vpop.f32.mrf.mxu0
        %v1048 = vadd.f32 %v978, %v1047
        %v1049 = vpop.f32.mrf.mxu0
        %v1050 = vadd.f32 %v978, %v1049
        %1051 = vmatmul.bf16.gmra.mxu0 %v955
        %v1052 = vpop.f32.mrf.mxu0
        %v1053 = vadd.f32 %v978, %v1052
        %v1054 = vpop.f32.mrf.mxu0
        %v1055 = vadd.f32 %v978, %v1054
        %1056 = vmatmul.bf16.gmra.mxu0 %v956
        %v1057 = vpop.f32.mrf.mxu0
        %v1058 = vadd.f32 %v978, %v1057
        %v1059 = vpop.f32.mrf.mxu0
        %v1060 = vadd.f32 %v978, %v1059
        %1061 = vmatmul.bf16.gmra.mxu0 %v957
        %v1062 = vpop.f32.mrf.mxu0
        %v1063 = vadd.f32 %v978, %v1062
        %v1064 = vpop.f32.mrf.mxu0
        %v1065 = vadd.f32 %v978, %v1064
        %1066 = vmatmul.bf16.gmra.mxu0 %v958
        %v1067 = vpop.f32.mrf.mxu0
        %v1068 = vadd.f32 %v978, %v1067
        %v1069 = vpop.f32.mrf.mxu0
        %v1070 = vadd.f32 %v978, %v1069
        %1071 = vmatmul.bf16.gmra.mxu0 %v959
        %v1072 = vpop.f32.mrf.mxu0
        %v1073 = vadd.f32 %v978, %v1072
        %v1074 = vpop.f32.mrf.mxu0
        %v1075 = vadd.f32 %v978, %v1074
        %1076 = vdwg.mxu0
        %v1077 = vmax.f32 %v1038, 0.0
        %v1078 = vmax.f32 %v1040, 0.0
        %v1079 = vmax.f32 %v1043, 0.0
        %v1080 = vmax.f32 %v1045, 0.0
        %v1081 = vmax.f32 %v1048, 0.0
        %v1082 = vmax.f32 %v1050, 0.0
        %v1083 = vmax.f32 %v1053, 0.0
        %v1084 = vmax.f32 %v1055, 0.0
        %v1085 = vmax.f32 %v1058, 0.0
        %v1086 = vmax.f32 %v1060, 0.0
        %v1087 = vmax.f32 %v1063, 0.0
        %v1088 = vmax.f32 %v1065, 0.0
        %v1089 = vmax.f32 %v1068, 0.0
        %v1090 = vmax.f32 %v1070, 0.0
        %v1091 = vmax.f32 %v1073, 0.0
        %v1092 = vmax.f32 %v1075, 0.0
        %v1093 = vld [vmem:[%s7] sm:$0x1]
        %v1094 = vld [vmem:[%s8] sm:$0x1]
        %1095 = vadd.xlane.f32.xlu0 %v1077
        %v1096 = vpop.xlane.xlu0 %1095
        %1097 = vadd.xlane.f32.xlu0 %v1078
        %v1098 = vpop.xlane.xlu0 %1097
        %1099 = vadd.xlane.f32.xlu0 %v1079
        %v1100 = vpop.xlane.xlu0 %1099
        %1101 = vadd.xlane.f32.xlu0 %v1080
        %v1102 = vpop.xlane.xlu0 %1101
        %1103 = vadd.xlane.f32.xlu0 %v1081
        %v1104 = vpop.xlane.xlu0 %1103
        %1105 = vadd.xlane.f32.xlu0 %v1082
        %v1106 = vpop.xlane.xlu0 %1105
        %1107 = vadd.xlane.f32.xlu0 %v1083
        %v1108 = vpop.xlane.xlu0 %1107
        %1109 = vadd.xlane.f32.xlu0 %v1084
        %v1110 = vpop.xlane.xlu0 %1109
        %1111 = vadd.xlane.f32.xlu0 %v1085
        %v1112 = vpop.xlane.xlu0 %1111
        %1113 = vadd.xlane.f32.xlu0 %v1086
        %v1114 = vpop.xlane.xlu0 %1113
        %1115 = vadd.xlane.f32.xlu0 %v1087
        %v1116 = vpop.xlane.xlu0 %1115
        %1117 = vadd.xlane.f32.xlu0 %v1088
        %v1118 = vpop.xlane.xlu0 %1117
        %1119 = vadd.xlane.f32.xlu0 %v1089
        %v1120 = vpop.xlane.xlu0 %1119
        %1121 = vadd.xlane.f32.xlu0 %v1090
        %v1122 = vpop.xlane.xlu0 %1121
        %1123 = vadd.xlane.f32.xlu0 %v1091
        %v1124 = vpop.xlane.xlu0 %1123
        %1125 = vadd.xlane.f32.xlu0 %v1092
        %v1126 = vpop.xlane.xlu0 %1125
        %v1127 = vmul.f32 %v1096, %v625
        %v1128 = vmul.f32 %v1098, %v625
        %v1129 = vmul.f32 %v1100, %v625
        %v1130 = vmul.f32 %v1102, %v625
        %v1131 = vmul.f32 %v1104, %v625
        %v1132 = vmul.f32 %v1106, %v625
        %v1133 = vmul.f32 %v1108, %v625
        %v1134 = vmul.f32 %v1110, %v625
        %v1135 = vmul.f32 %v1112, %v625
        %v1136 = vmul.f32 %v1114, %v625
        %v1137 = vmul.f32 %v1116, %v625
        %v1138 = vmul.f32 %v1118, %v625
        %v1139 = vmul.f32 %v1120, %v625
        %v1140 = vmul.f32 %v1122, %v625
        %v1141 = vmul.f32 %v1124, %v625
        %v1142 = vmul.f32 %v1126, %v625
        %v1143 = vsub.f32 %v1077, %v1127
        %v1144 = vsub.f32 %v1078, %v1128
        %v1145 = vsub.f32 %v1079, %v1129
        %v1146 = vsub.f32 %v1080, %v1130
        %v1147 = vsub.f32 %v1081, %v1131
        %v1148 = vsub.f32 %v1082, %v1132
        %v1149 = vsub.f32 %v1083, %v1133
        %v1150 = vsub.f32 %v1084, %v1134
        %v1151 = vsub.f32 %v1085, %v1135
        %v1152 = vsub.f32 %v1086, %v1136
        %v1153 = vsub.f32 %v1087, %v1137
        %v1154 = vsub.f32 %v1088, %v1138
        %v1155 = vsub.f32 %v1089, %v1139
        %v1156 = vsub.f32 %v1090, %v1140
        %v1157 = vsub.f32 %v1091, %v1141
        %v1158 = vsub.f32 %v1092, %v1142
        %v1159 = vmul.f32 %v1143, %v1143
        %v1160 = vmul.f32 %v1144, %v1144
        %v1161 = vmul.f32 %v1145, %v1145
        %v1162 = vmul.f32 %v1146, %v1146
        %v1163 = vmul.f32 %v1147, %v1147
        %v1164 = vmul.f32 %v1148, %v1148
        %v1165 = vmul.f32 %v1149, %v1149
        %v1166 = vmul.f32 %v1150, %v1150
        %v1167 = vmul.f32 %v1151, %v1151
        %v1168 = vmul.f32 %v1152, %v1152
        %v1169 = vmul.f32 %v1153, %v1153
        %v1170 = vmul.f32 %v1154, %v1154
        %v1171 = vmul.f32 %v1155, %v1155
        %v1172 = vmul.f32 %v1156, %v1156
        %v1173 = vmul.f32 %v1157, %v1157
        %v1174 = vmul.f32 %v1158, %v1158
        %1175 = vadd.xlane.f32.xlu0 %v1159
        %v1176 = vpop.xlane.xlu0 %1175
        %1177 = vadd.xlane.f32.xlu0 %v1160
        %v1178 = vpop.xlane.xlu0 %1177
        %1179 = vadd.xlane.f32.xlu0 %v1161
        %v1180 = vpop.xlane.xlu0 %1179
        %1181 = vadd.xlane.f32.xlu0 %v1162
        %v1182 = vpop.xlane.xlu0 %1181
        %1183 = vadd.xlane.f32.xlu0 %v1163
        %v1184 = vpop.xlane.xlu0 %1183
        %1185 = vadd.xlane.f32.xlu0 %v1164
        %v1186 = vpop.xlane.xlu0 %1185
        %1187 = vadd.xlane.f32.xlu0 %v1165
        %v1188 = vpop.xlane.xlu0 %1187
        %1189 = vadd.xlane.f32.xlu0 %v1166
        %v1190 = vpop.xlane.xlu0 %1189
        %1191 = vadd.xlane.f32.xlu0 %v1167
        %v1192 = vpop.xlane.xlu0 %1191
        %1193 = vadd.xlane.f32.xlu0 %v1168
        %v1194 = vpop.xlane.xlu0 %1193
        %1195 = vadd.xlane.f32.xlu0 %v1169
        %v1196 = vpop.xlane.xlu0 %1195
        %1197 = vadd.xlane.f32.xlu0 %v1170
        %v1198 = vpop.xlane.xlu0 %1197
        %1199 = vadd.xlane.f32.xlu0 %v1171
        %v1200 = vpop.xlane.xlu0 %1199
        %1201 = vadd.xlane.f32.xlu0 %v1172
        %v1202 = vpop.xlane.xlu0 %1201
        %1203 = vadd.xlane.f32.xlu0 %v1173
        %v1204 = vpop.xlane.xlu0 %1203
        %1205 = vadd.xlane.f32.xlu0 %v1174
        %v1206 = vpop.xlane.xlu0 %1205
        %v1207 = vmul.f32 %v1176, %v625
        %v1208 = vmul.f32 %v1178, %v625
        %v1209 = vmul.f32 %v1180, %v625
        %v1210 = vmul.f32 %v1182, %v625
        %v1211 = vmul.f32 %v1184, %v625
        %v1212 = vmul.f32 %v1186, %v625
        %v1213 = vmul.f32 %v1188, %v625
        %v1214 = vmul.f32 %v1190, %v625
        %v1215 = vmul.f32 %v1192, %v625
        %v1216 = vmul.f32 %v1194, %v625
        %v1217 = vmul.f32 %v1196, %v625
        %v1218 = vmul.f32 %v1198, %v625
        %v1219 = vmul.f32 %v1200, %v625
        %v1220 = vmul.f32 %v1202, %v625
        %v1221 = vmul.f32 %v1204, %v625
        %v1222 = vmul.f32 %v1206, %v625
        %v1223 = vadd.f32 %v1207, 1e-05
        %v1224 = vadd.f32 %v1208, 1e-05
        %v1225 = vadd.f32 %v1209, 1e-05
        %v1226 = vadd.f32 %v1210, 1e-05
        %v1227 = vadd.f32 %v1211, 1e-05
        %v1228 = vadd.f32 %v1212, 1e-05
        %v1229 = vadd.f32 %v1213, 1e-05
        %v1230 = vadd.f32 %v1214, 1e-05
        %v1231 = vadd.f32 %v1215, 1e-05
        %v1232 = vadd.f32 %v1216, 1e-05
        %v1233 = vadd.f32 %v1217, 1e-05
        %v1234 = vadd.f32 %v1218, 1e-05
        %v1235 = vadd.f32 %v1219, 1e-05
        %v1236 = vadd.f32 %v1220, 1e-05
        %v1237 = vadd.f32 %v1221, 1e-05
        %v1238 = vadd.f32 %v1222, 1e-05
        %v1239 = vrsqrt.pop %v1223
        %v1240 = vmul.f32 %v1239, %v1223
        %v1241 = vmul.f32 %v1240, %v1239
        %v1242 = vmul.f32 0.5, %v1241
        %v1243 = vsub.f32 1.5, %v1242
        %v1244 = vmul.f32 %v1239, %v1243
        %vm1245 = vweird.f32 %v1223
        %vm1246 = vweird.f32 %v1239
        %vm1247 = vmor %vm1245, %vm1246
        %v1248 = vsel %vm1247, %v1239, %v1244
        %v1249 = vrsqrt.pop %v1224
        %v1250 = vmul.f32 %v1249, %v1224
        %v1251 = vmul.f32 %v1250, %v1249
        %v1252 = vmul.f32 0.5, %v1251
        %v1253 = vsub.f32 1.5, %v1252
        %v1254 = vmul.f32 %v1249, %v1253
        %vm1255 = vweird.f32 %v1224
        %vm1256 = vweird.f32 %v1249
        %vm1257 = vmor %vm1255, %vm1256
        %v1258 = vsel %vm1257, %v1249, %v1254
        %v1259 = vrsqrt.pop %v1225
        %v1260 = vmul.f32 %v1259, %v1225
        %v1261 = vmul.f32 %v1260, %v1259
        %v1262 = vmul.f32 0.5, %v1261
        %v1263 = vsub.f32 1.5, %v1262
        %v1264 = vmul.f32 %v1259, %v1263
        %vm1265 = vweird.f32 %v1225
        %vm1266 = vweird.f32 %v1259
        %vm1267 = vmor %vm1265, %vm1266
        %v1268 = vsel %vm1267, %v1259, %v1264
        %v1269 = vrsqrt.pop %v1226
        %v1270 = vmul.f32 %v1269, %v1226
        %v1271 = vmul.f32 %v1270, %v1269
        %v1272 = vmul.f32 0.5, %v1271
        %v1273 = vsub.f32 1.5, %v1272
        %v1274 = vmul.f32 %v1269, %v1273
        %vm1275 = vweird.f32 %v1226
        %vm1276 = vweird.f32 %v1269
        %vm1277 = vmor %vm1275, %vm1276
        %v1278 = vsel %vm1277, %v1269, %v1274
        %v1279 = vrsqrt.pop %v1227
        %v1280 = vmul.f32 %v1279, %v1227
        %v1281 = vmul.f32 %v1280, %v1279
        %v1282 = vmul.f32 0.5, %v1281
        %v1283 = vsub.f32 1.5, %v1282
        %v1284 = vmul.f32 %v1279, %v1283
        %vm1285 = vweird.f32 %v1227
        %vm1286 = vweird.f32 %v1279
        %vm1287 = vmor %vm1285, %vm1286
        %v1288 = vsel %vm1287, %v1279, %v1284
        %v1289 = vrsqrt.pop %v1228
        %v1290 = vmul.f32 %v1289, %v1228
        %v1291 = vmul.f32 %v1290, %v1289
        %v1292 = vmul.f32 0.5, %v1291
        %v1293 = vsub.f32 1.5, %v1292
        %v1294 = vmul.f32 %v1289, %v1293
        %vm1295 = vweird.f32 %v1228
        %vm1296 = vweird.f32 %v1289
        %vm1297 = vmor %vm1295, %vm1296
        %v1298 = vsel %vm1297, %v1289, %v1294
        %v1299 = vrsqrt.pop %v1229
        %v1300 = vmul.f32 %v1299, %v1229
        %v1301 = vmul.f32 %v1300, %v1299
        %v1302 = vmul.f32 0.5, %v1301
        %v1303 = vsub.f32 1.5, %v1302
        %v1304 = vmul.f32 %v1299, %v1303
        %vm1305 = vweird.f32 %v1229
        %vm1306 = vweird.f32 %v1299
        %vm1307 = vmor %vm1305, %vm1306
        %v1308 = vsel %vm1307, %v1299, %v1304
        %v1309 = vrsqrt.pop %v1230
        %v1310 = vmul.f32 %v1309, %v1230
        %v1311 = vmul.f32 %v1310, %v1309
        %v1312 = vmul.f32 0.5, %v1311
        %v1313 = vsub.f32 1.5, %v1312
        %v1314 = vmul.f32 %v1309, %v1313
        %vm1315 = vweird.f32 %v1230
        %vm1316 = vweird.f32 %v1309
        %vm1317 = vmor %vm1315, %vm1316
        %v1318 = vsel %vm1317, %v1309, %v1314
        %v1319 = vrsqrt.pop %v1231
        %v1320 = vmul.f32 %v1319, %v1231
        %v1321 = vmul.f32 %v1320, %v1319
        %v1322 = vmul.f32 0.5, %v1321
        %v1323 = vsub.f32 1.5, %v1322
        %v1324 = vmul.f32 %v1319, %v1323
        %vm1325 = vweird.f32 %v1231
        %vm1326 = vweird.f32 %v1319
        %vm1327 = vmor %vm1325, %vm1326
        %v1328 = vsel %vm1327, %v1319, %v1324
        %v1329 = vrsqrt.pop %v1232
        %v1330 = vmul.f32 %v1329, %v1232
        %v1331 = vmul.f32 %v1330, %v1329
        %v1332 = vmul.f32 0.5, %v1331
        %v1333 = vsub.f32 1.5, %v1332
        %v1334 = vmul.f32 %v1329, %v1333
        %vm1335 = vweird.f32 %v1232
        %vm1336 = vweird.f32 %v1329
        %vm1337 = vmor %vm1335, %vm1336
        %v1338 = vsel %vm1337, %v1329, %v1334
        %v1339 = vrsqrt.pop %v1233
        %v1340 = vmul.f32 %v1339, %v1233
        %v1341 = vmul.f32 %v1340, %v1339
        %v1342 = vmul.f32 0.5, %v1341
        %v1343 = vsub.f32 1.5, %v1342
        %v1344 = vmul.f32 %v1339, %v1343
        %vm1345 = vweird.f32 %v1233
        %vm1346 = vweird.f32 %v1339
        %vm1347 = vmor %vm1345, %vm1346
        %v1348 = vsel %vm1347, %v1339, %v1344
        %v1349 = vrsqrt.pop %v1234
        %v1350 = vmul.f32 %v1349, %v1234
        %v1351 = vmul.f32 %v1350, %v1349
        %v1352 = vmul.f32 0.5, %v1351
        %v1353 = vsub.f32 1.5, %v1352
        %v1354 = vmul.f32 %v1349, %v1353
        %vm1355 = vweird.f32 %v1234
        %vm1356 = vweird.f32 %v1349
        %vm1357 = vmor %vm1355, %vm1356
        %v1358 = vsel %vm1357, %v1349, %v1354
        %v1359 = vrsqrt.pop %v1235
        %v1360 = vmul.f32 %v1359, %v1235
        %v1361 = vmul.f32 %v1360, %v1359
        %v1362 = vmul.f32 0.5, %v1361
        %v1363 = vsub.f32 1.5, %v1362
        %v1364 = vmul.f32 %v1359, %v1363
        %vm1365 = vweird.f32 %v1235
        %vm1366 = vweird.f32 %v1359
        %vm1367 = vmor %vm1365, %vm1366
        %v1368 = vsel %vm1367, %v1359, %v1364
        %v1369 = vrsqrt.pop %v1236
        %v1370 = vmul.f32 %v1369, %v1236
        %v1371 = vmul.f32 %v1370, %v1369
        %v1372 = vmul.f32 0.5, %v1371
        %v1373 = vsub.f32 1.5, %v1372
        %v1374 = vmul.f32 %v1369, %v1373
        %vm1375 = vweird.f32 %v1236
        %vm1376 = vweird.f32 %v1369
        %vm1377 = vmor %vm1375, %vm1376
        %v1378 = vsel %vm1377, %v1369, %v1374
        %v1379 = vrsqrt.pop %v1237
        %v1380 = vmul.f32 %v1379, %v1237
        %v1381 = vmul.f32 %v1380, %v1379
        %v1382 = vmul.f32 0.5, %v1381
        %v1383 = vsub.f32 1.5, %v1382
        %v1384 = vmul.f32 %v1379, %v1383
        %vm1385 = vweird.f32 %v1237
        %vm1386 = vweird.f32 %v1379
        %vm1387 = vmor %vm1385, %vm1386
        %v1388 = vsel %vm1387, %v1379, %v1384
        %v1389 = vrsqrt.pop %v1238
        %v1390 = vmul.f32 %v1389, %v1238
        %v1391 = vmul.f32 %v1390, %v1389
        %v1392 = vmul.f32 0.5, %v1391
        %v1393 = vsub.f32 1.5, %v1392
        %v1394 = vmul.f32 %v1389, %v1393
        %vm1395 = vweird.f32 %v1238
        %vm1396 = vweird.f32 %v1389
        %vm1397 = vmor %vm1395, %vm1396
        %v1398 = vsel %vm1397, %v1389, %v1394
        %v1399 = vmul.f32 %v1143, %v1248
        %v1400 = vmul.f32 %v1144, %v1258
        %v1401 = vmul.f32 %v1145, %v1268
        %v1402 = vmul.f32 %v1146, %v1278
        %v1403 = vmul.f32 %v1147, %v1288
        %v1404 = vmul.f32 %v1148, %v1298
        %v1405 = vmul.f32 %v1149, %v1308
        %v1406 = vmul.f32 %v1150, %v1318
        %v1407 = vmul.f32 %v1151, %v1328
        %v1408 = vmul.f32 %v1152, %v1338
        %v1409 = vmul.f32 %v1153, %v1348
        %v1410 = vmul.f32 %v1154, %v1358
        %v1411 = vmul.f32 %v1155, %v1368
        %v1412 = vmul.f32 %v1156, %v1378
        %v1413 = vmul.f32 %v1157, %v1388
        %v1414 = vmul.f32 %v1158, %v1398
        %v1416 = vperm.slane %v1093, 0
        %v1418 = vmul.f32 %v1399, %v1416
        %v1419 = vmul.f32 %v1400, %v1416
        %v1420 = vmul.f32 %v1401, %v1416
        %v1421 = vmul.f32 %v1402, %v1416
        %v1422 = vmul.f32 %v1403, %v1416
        %v1423 = vmul.f32 %v1404, %v1416
        %v1424 = vmul.f32 %v1405, %v1416
        %v1425 = vmul.f32 %v1406, %v1416
        %v1426 = vmul.f32 %v1407, %v1416
        %v1427 = vmul.f32 %v1408, %v1416
        %v1428 = vmul.f32 %v1409, %v1416
        %v1429 = vmul.f32 %v1410, %v1416
        %v1430 = vmul.f32 %v1411, %v1416
        %v1431 = vmul.f32 %v1412, %v1416
        %v1432 = vmul.f32 %v1413, %v1416
        %v1433 = vmul.f32 %v1414, %v1416
        %v1435 = vperm.slane %v1094, 0
        %v1437 = vadd.f32 %v1418, %v1435
        %v1438 = vadd.f32 %v1419, %v1435
        %v1439 = vadd.f32 %v1420, %v1435
        %v1440 = vadd.f32 %v1421, %v1435
        %v1441 = vadd.f32 %v1422, %v1435
        %v1442 = vadd.f32 %v1423, %v1435
        %v1443 = vadd.f32 %v1424, %v1435
        %v1444 = vadd.f32 %v1425, %v1435
        %v1445 = vadd.f32 %v1426, %v1435
        %v1446 = vadd.f32 %v1427, %v1435
        %v1447 = vadd.f32 %v1428, %v1435
        %v1448 = vadd.f32 %v1429, %v1435
        %v1449 = vadd.f32 %v1430, %v1435
        %v1450 = vadd.f32 %v1431, %v1435
        %v1451 = vadd.f32 %v1432, %v1435
        %v1452 = vadd.f32 %v1433, %v1435
        %v1453 = vpack.c.bf16 %v1437, %v1437
        %v1454 = vpack.c.bf16 %v1438, %v1438
        %v1455 = vpack.c.bf16 %v1439, %v1439
        %v1456 = vpack.c.bf16 %v1440, %v1440
        %v1457 = vpack.c.bf16 %v1441, %v1441
        %v1458 = vpack.c.bf16 %v1442, %v1442
        %v1459 = vpack.c.bf16 %v1443, %v1443
        %v1460 = vpack.c.bf16 %v1444, %v1444
        %v1461 = vpack.c.bf16 %v1445, %v1445
        %v1462 = vpack.c.bf16 %v1446, %v1446
        %v1463 = vpack.c.bf16 %v1447, %v1447
        %v1464 = vpack.c.bf16 %v1448, %v1448
        %v1465 = vpack.c.bf16 %v1449, %v1449
        %v1466 = vpack.c.bf16 %v1450, %v1450
        %v1467 = vpack.c.bf16 %v1451, %v1451
        %v1468 = vpack.c.bf16 %v1452, %v1452
        %1469 = vst [vmem:[%s385] sm:$0xf] %v1453
        %1470 = vst [vmem:[%s385 + $0x4] sm:$0xf] %v1454
        %1471 = vst [vmem:[%s385 + $0x8] sm:$0xf] %v1455
        %1472 = vst [vmem:[%s385 + $0xc] sm:$0xf] %v1456
        %1473 = vst [vmem:[%s385 + $0x10] sm:$0xf] %v1457
        %1474 = vst [vmem:[%s385 + $0x14] sm:$0xf] %v1458
        %1475 = vst [vmem:[%s385 + $0x18] sm:$0xf] %v1459
        %1476 = vst [vmem:[%s385 + $0x1c] sm:$0xf] %v1460
        %1477 = vst [vmem:[%s385 + $0x20] sm:$0xf] %v1461
        %1478 = vst [vmem:[%s385 + $0x24] sm:$0xf] %v1462
        %1479 = vst [vmem:[%s385 + $0x28] sm:$0xf] %v1463
        %1480 = vst [vmem:[%s385 + $0x2c] sm:$0xf] %v1464
        %1481 = vst [vmem:[%s385 + $0x30] sm:$0xf] %v1465
        %1482 = vst [vmem:[%s385 + $0x34] sm:$0xf] %v1466
        %1483 = vst [vmem:[%s385 + $0x38] sm:$0xf] %v1467
        %1484 = vst [vmem:[%s385 + $0x3c] sm:$0xf] %v1468
        %s1485 = sand.u32 %s229, 1
        %s1486 = scalar_lea.sflag [#allocation4], %s1485
        %s1487 = sand.u32 %s229, 1
        %s1488 = smul.addr %s1487, 64
        %s1489 = scalar_lea.vmem [#allocation8], %s1488
        // Predicated region
        $region69: #{tpu_custom_call.1} parent=55 // pred_check
          %p1490 = pneg %p239
        $region70: #{tpu_custom_call.1} parent=55 // pred_check_branch
          %1492 = sbr.rel (%p1490) target = $region72
        $region71: #{tpu_custom_call.1} parent=55 // pred_region
          %s1493 = smul.u32 16, %s27
          %1495 = vsyncadd %s1486, 0
          %s1496 = smul.addr %s1493, 4
          %s1497 = scalar_lea.hbm %s9, %s1496
          %s1498 = sshll.u32 %s1489, 4
          %s1499 = int_to_ptr.vmem [resolvable:$true] %s1498
          %s1500 = sshll.u32 %s1497, 4
          %s1501 = int_to_ptr.hbm [resolvable:$true] %s1500
          %1506 = dma.vmem_to_hbm [thread:$0]  %s1499, 1024, %s1501, %s1486, 64, 64, 4
        $region72: #{tpu_custom_call.1} parent=55 // pred_fallthru
          _
      $region56: #{tpu_custom_call.1} parent=5 // pred_fallthru
        _
      %p1507 = scmp.le.s32.totalorder 2, %s22
      // Predicated region
      $region73: #{tpu_custom_call.1} parent=5 // pred_check
        %p1508 = pneg %p1507
      $region74: #{tpu_custom_call.1} parent=5 // pred_check_branch
        %1510 = sbr.rel (%p1508) target = $region76
      $region75: #{tpu_custom_call.1} parent=5 // pred_region
        %s1511 = ssub.s32 %s22, 2
        // Predicated region
        $region77: #{tpu_custom_call.1} parent=75 // pred_check
          %p1512 = pneg %p245
        $region78: #{tpu_custom_call.1} parent=75 // pred_check_branch
          %1514 = sbr.rel (%p1512) target = $region80
        $region79: #{tpu_custom_call.1} parent=75 // pred_region
          %s1515 = sand.u32 %s230, 1
          %s1516 = scalar_lea.sflag [#allocation4], %s1515
          %s1517 = sand.u32 %s230, 1
          %s1518 = smul.addr %s1517, 64
          %s1519 = scalar_lea.vmem [#allocation8], %s1518
          %1521 = dma.done %s1516, 1024
        $region80: #{tpu_custom_call.1} parent=75 // pred_fallthru
          _
      $region76: #{tpu_custom_call.1} parent=5 // pred_fallthru
        _
    $region6: #{tpu_custom_call.1} parent=1 // loop_footer
      %s26 = sadd.s32 1, %s22
    $region7: #{tpu_custom_call.1} parent=1 // loop_footer_branch
      %21 = sbr.rel target = $region3
    $region8: #{tpu_custom_call.1} parent=1 // loop_exit
      _
    %1522 = vsyncpa [#allocation3], 1
    %s1523 = scalar_lea.sflag [#allocation3], 1
    %1524 = vsyncpa %s1523, 1
    %1525 = vsyncpa [#allocation6], 1
    %1526 = vsyncpa [#allocation4], 1
    %s1527 = scalar_lea.sflag [#allocation4], 1
    %1528 = vsyncpa %s1527, 1

</llo_original>
